<compile_context>
chip_gen: v5e
topology: v5e:2x2
jax: 0.10.0
libtpu: 0.0.40
codegen_flags: <defaults>
</compile_context>

<pallas_src>
import math
from functools import partial

import jax
import jax.numpy as jnp
from jax.experimental import pallas as pl
from jax.experimental.pallas import tpu as pltpu


# ----------------------------------------------------------------------------
# Config
# ----------------------------------------------------------------------------

CFG = [8, "M", 16, "M", 32, "M"]   # small make_features(cfg) analog
NUM_CLASSES = 10
HIDDEN = 64                        # analog of 4096
HP = 128                           # padded hidden width (keeps classifier matmuls 128-wide)
OP = 128                           # lane-padded logits width (sliced to NUM_CLASSES outside)


# ----------------------------------------------------------------------------
# Pallas kernels
# ----------------------------------------------------------------------------

def conv3x3_relu_kernel(x_ref, w_ref, b_ref, o_ref, *, pool, pad_out):
    """Fused 3x3 same-pad conv (9 accumulating matmuls) + bias + ReLU (+ 2x2 maxpool).

    x_ref: (1, H+2, W+2, Cin) bf16  spatially pre-padded NHWC image
    w_ref: (9, Cin, Cout)     bf16  conv weight, one (Cin, Cout) block per tap
    b_ref: (1, Cout)          f32   bias
    o_ref: (1, Ho+2, Wo+2, Cout) bf16 if pad_out (halo zeroed in-kernel)
           (1, Ho,   Wo,   Cout) bf16 otherwise
    """
    Hp2, Wp2, Cin = x_ref.shape[1], x_ref.shape[2], x_ref.shape[3]
    H, W = Hp2 - 2, Wp2 - 2
    Cout = o_ref.shape[3]

    xb = x_ref[0]                                   # (H+2, W+2, Cin) bf16, no cast needed

    # 9 accumulating MXU matmuls, f32 accumulation (no im2col patch buffer).
    acc = jnp.zeros((H * W, Cout), jnp.float32)
    for k, (kh, kw) in enumerate([(i, j) for i in range(3) for j in range(3)]):
        tap = xb[kh:kh + H, kw:kw + W, :].reshape(H * W, Cin)
        acc = acc + jnp.dot(tap, w_ref[k], preferred_element_type=jnp.float32)

    acc = jnp.maximum(acc + b_ref[...], 0.0)

    if pool:
        Ho, Wo = H // 2, W // 2
        acc = acc.reshape(Ho, 2, Wo, 2, Cout)
        acc = jnp.max(acc, axis=(1, 3))             # vectorized 2x2 max-pool
    else:
        Ho, Wo = H, W
        acc = acc.reshape(Ho, Wo, Cout)

    res = acc.astype(o_ref.dtype)                   # (Ho, Wo, Cout)

    if pad_out:
        # Write a zero halo + interior so the NEXT layer's input is already
        # same-padded (eliminates the inter-layer jnp.pad HBM round trip).
        o_ref[...] = jnp.zeros(o_ref.shape, o_ref.dtype)
        o_ref[0, 1:1 + Ho, 1:1 + Wo, :] = res
    else:
        o_ref[...] = res[None]


def classifier_kernel(x_ref, w1_ref, b1_ref, w2_ref, b2_ref, w3_ref, b3_ref, o_ref):
    """Fused classifier: Linear+ReLU -> Linear+ReLU -> Linear (Dropout = identity).

    x_ref: (TN, F=128) bf16  NHWC-flattened features (flatten permutation folded
                             into w1 rows at init time)
    w*_ref: bf16 weights (in, out); b*_ref: (1, out) f32
    o_ref: (TN, OP=128) f32  lane-dense padded logits
    """
    x = x_ref[...].astype(jnp.bfloat16)
    h1 = jnp.dot(x, w1_ref[...], preferred_element_type=jnp.float32) + b1_ref[...]
    h1 = jnp.maximum(h1, 0.0)
    # TODO(synk): nn.Dropout(p=0.5) is inference-mode identity here (no RNG masking).
    h2 = jnp.dot(h1.astype(jnp.bfloat16), w2_ref[...],
                 preferred_element_type=jnp.float32) + b2_ref[...]
    h2 = jnp.maximum(h2, 0.0)
    out = jnp.dot(h2.astype(jnp.bfloat16), w3_ref[...],
                  preferred_element_type=jnp.float32) + b3_ref[...]
    o_ref[...] = out.astype(o_ref.dtype)


# ----------------------------------------------------------------------------
# Wrappers
# ----------------------------------------------------------------------------

def conv3x3_relu(x, w, b, *, pool, pad_out):
    """x: (N, H+2, W+2, Cin) bf16 pre-padded; w: (9, Cin, Cout) bf16; b: (1, Cout) f32."""
    N, Hp2, Wp2, Cin = x.shape
    H, W = Hp2 - 2, Wp2 - 2
    Cout = w.shape[2]
    Ho, Wo = (H // 2, W // 2) if pool else (H, W)
    oH, oW = (Ho + 2, Wo + 2) if pad_out else (Ho, Wo)
    return pl.pallas_call(
        partial(conv3x3_relu_kernel, pool=pool, pad_out=pad_out),
        grid=(N,),
        in_specs=[
            pl.BlockSpec((1, Hp2, Wp2, Cin), lambda n: (n, 0, 0, 0)),
            pl.BlockSpec(w.shape, lambda n: (0, 0, 0)),
            pl.BlockSpec(b.shape, lambda n: (0, 0)),
        ],
        out_specs=pl.BlockSpec((1, oH, oW, Cout), lambda n: (n, 0, 0, 0)),
        out_shape=jax.ShapeDtypeStruct((N, oH, oW, Cout), jnp.bfloat16),
        # "parallel": shards the batch across both TensorCores on v7x; on
        # single-TC v5e/v6e it is just a (tiny) serial loop.
        compiler_params=pltpu.CompilerParams(dimension_semantics=("parallel",)),
    )(x, w, b)


def classifier(x, classifier_params):
    """x: (N, F) bf16 flattened features -> (N, OP) f32 padded logits."""
    (w1, b1), (w2, b2), (w3, b3) = classifier_params
    N, F = x.shape
    TN = N if N < 128 else 128
    assert N % TN == 0, "batch must divide the classifier batch tile"
    return pl.pallas_call(
        classifier_kernel,
        grid=(N // TN,),
        in_specs=[
            pl.BlockSpec((TN, F), lambda i: (i, 0)),
            pl.BlockSpec(w1.shape, lambda i: (0, 0)),   # weights stay VMEM-resident
            pl.BlockSpec(b1.shape, lambda i: (0, 0)),
            pl.BlockSpec(w2.shape, lambda i: (0, 0)),
            pl.BlockSpec(b2.shape, lambda i: (0, 0)),
            pl.BlockSpec(w3.shape, lambda i: (0, 0)),
            pl.BlockSpec(b3.shape, lambda i: (0, 0)),
        ],
        out_specs=pl.BlockSpec((TN, OP), lambda i: (i, 0)),
        out_shape=jax.ShapeDtypeStruct((N, OP), jnp.float32),
        compiler_params=pltpu.CompilerParams(dimension_semantics=("parallel",)),
    )(x, w1, b1, w2, b2, w3, b3)


# ----------------------------------------------------------------------------
# Parameter init (deterministic, xavier_uniform like VGG._initialize_weights)
# ----------------------------------------------------------------------------

def _xavier_uniform(key, shape, fan_in, fan_out):
    bound = math.sqrt(6.0 / (fan_in + fan_out))
    return jax.random.uniform(key, shape, jnp.float32, -bound, bound)


def init_params(key, in_channels, spatial):
    features = []
    c = in_channels
    s = spatial
    idx = 0
    while idx < len(CFG):
        v = CFG[idx]
        assert v != "M", "cfg must not start a block with 'M'"
        cout = v
        key, kw = jax.random.split(key)
        w = _xavier_uniform(kw, (3, 3, c, cout), fan_in=c * 9, fan_out=cout * 9)
        wf = w.reshape(9, c, cout).astype(jnp.bfloat16)       # true channel widths
        b = jnp.zeros((1, cout), jnp.float32)
        pool = (idx + 1 < len(CFG) and CFG[idx + 1] == "M")
        features.append((wf, b, pool))
        c = cout
        if pool:
            s //= 2
            idx += 2
        else:
            idx += 1

    feat_dim = c * s * s                      # true PyTorch flatten dim (NCHW order)

    key, k1, k2, k3 = jax.random.split(key, 4)

    # Linear 1: fold the NCHW flatten permutation into the rows (rows end up in
    # (H, W, C) order matching our NHWC flatten); no row padding (feat_dim used as-is).
    w1 = _xavier_uniform(k1, (feat_dim, HIDDEN), fan_in=feat_dim, fan_out=HIDDEN)
    w1 = w1.reshape(c, s, s, HIDDEN)                      # rows ordered (C, H, W)
    w1 = jnp.transpose(w1, (1, 2, 0, 3)).reshape(s * s * c, HIDDEN)   # (H, W, C) order
    w1p = jnp.zeros((feat_dim, HP), jnp.float32).at[:, :HIDDEN].set(w1)
    w1p = w1p.astype(jnp.bfloat16)
    b1 = jnp.zeros((1, HP), jnp.float32)

    w2 = _xavier_uniform(k2, (HIDDEN, HIDDEN), fan_in=HIDDEN, fan_out=HIDDEN)
    w2p = jnp.zeros((HP, HP), jnp.float32).at[:HIDDEN, :HIDDEN].set(w2)
    w2p = w2p.astype(jnp.bfloat16)
    b2 = jnp.zeros((1, HP), jnp.float32)

    w3 = _xavier_uniform(k3, (HIDDEN, NUM_CLASSES), fan_in=HIDDEN, fan_out=NUM_CLASSES)
    w3p = jnp.zeros((HP, OP), jnp.float32).at[:HIDDEN, :NUM_CLASSES].set(w3)
    w3p = w3p.astype(jnp.bfloat16)
    b3 = jnp.zeros((1, OP), jnp.float32)

    return {
        "features": features,
        "classifier": [(w1p, b1), (w2p, b2), (w3p, b3)],
    }


# ----------------------------------------------------------------------------
# Forward pass (mirrors VGG.forward)
# ----------------------------------------------------------------------------

def vgg_forward(x_nchw, params):
    N = x_nchw.shape[0]
    # NCHW (PyTorch) -> NHWC + one-time entry spatial pad + bf16 cast (entry glue only;
    # all subsequent layer inputs come pre-padded out of the previous Pallas kernel).
    x = jnp.transpose(x_nchw, (0, 2, 3, 1))
    x = jnp.pad(x, ((0, 0), (1, 1), (1, 1), (0, 0))).astype(jnp.bfloat16)

    # self.features(x): fused conv+ReLU(+pool) Pallas kernels; all but the last
    # write a halo'd output so the next layer needs no external padding.
    feats = params["features"]
    for li, (w, b, pool) in enumerate(feats):
        x = conv3x3_relu(x, w, b, pool=pool, pad_out=(li + 1 < len(feats)))

    # torch.flatten(x, 1): the NCHW permutation is folded into classifier w1,
    # so we flatten the NHWC activation directly (true width, no lane padding).
    xf = x.reshape(N, -1)

    # self.classifier(x): one fused Pallas kernel; slice off lane padding outside.
    logits_padded = classifier(xf, params["classifier"])
    return logits_padded[:, :NUM_CLASSES]


if __name__ == "__main__":
    N, CIN, H, W = 2, 3, 16, 16
    key = jax.random.PRNGKey(0)
    kx, kp = jax.random.split(key)
    x = jax.random.normal(kx, (N, CIN, H, W), jnp.float32)   # NCHW like PyTorch
    params = init_params(kp, in_channels=CIN, spatial=H)

    out = vgg_forward(x, params)
    out = jax.block_until_ready(out)
    assert out.shape == (N, NUM_CLASSES), out.shape
    assert bool(jnp.all(jnp.isfinite(out)))
    print("KERNEL_OK")
</pallas_src>

<mosaic_0001>
module attributes {stable_mosaic.version = 11 : i64} {
  func.func @conv3x3_relu_kernel(%arg0: i32, %arg1: memref<1x18x18x3xbf16, #tpu.memory_space<vmem>>, %arg2: memref<9x3x8xbf16, #tpu.memory_space<vmem>>, %arg3: memref<1x8xf32, #tpu.memory_space<vmem>>, %arg4: memref<1x10x10x8xbf16, #tpu.memory_space<vmem>>) attributes {dimension_semantics = [#tpu.dimension_semantics<parallel>], iteration_bounds = array<i64: 2>, scalar_prefetch = 0 : i64, scratch_operands = 0 : i64, tpu.core_type = #tpu.core_type<tc>, window_params = [{transform_indices = @transform_0, window_bounds = array<i64: 1, 18, 18, 3>}, {pipeline_mode = #tpu.pipeline_mode<synchronous>, transform_indices = @transform_1, window_bounds = array<i64: 9, 3, 8>}, {pipeline_mode = #tpu.pipeline_mode<synchronous>, transform_indices = @transform_2, window_bounds = array<i64: 1, 8>}, {transform_indices = @transform_3, window_bounds = array<i64: 1, 10, 10, 8>}]} {
    %c0 = arith.constant 0 : index
    %c0_0 = arith.constant 0 : index
    %c0_1 = arith.constant 0 : index
    %c0_2 = arith.constant 0 : index
    %0 = vector.load %arg1[%c0, %c0_0, %c0_1, %c0_2] : memref<1x18x18x3xbf16, #tpu.memory_space<vmem>>, vector<1x18x18x3xbf16>
    %1 = vector.shape_cast %0 : vector<1x18x18x3xbf16> to vector<18x18x3xbf16>
    %cst = arith.constant 0.000000e+00 : f32
    %2 = vector.broadcast %cst : f32 to vector<256x8xf32>
    %3 = vector.extract_strided_slice %1 {offsets = [0, 0, 0], sizes = [16, 16, 3], strides = [1, 1, 1]} : vector<18x18x3xbf16> to vector<16x16x3xbf16>
    %4 = vector.shape_cast %3 : vector<16x16x3xbf16> to vector<256x3xbf16>
    %c0_3 = arith.constant 0 : index
    %c0_4 = arith.constant 0 : index
    %c0_5 = arith.constant 0 : index
    %5 = vector.load %arg2[%c0_3, %c0_4, %c0_5] : memref<9x3x8xbf16, #tpu.memory_space<vmem>>, vector<1x3x8xbf16>
    %6 = vector.shape_cast %5 : vector<1x3x8xbf16> to vector<3x8xbf16>
    %cst_6 = arith.constant dense<0.000000e+00> : vector<256x8xf32>
    %7 = tpu.matmul %4, %6, %cst_6 {dimension_numbers = #tpu.dot_dimension_numbers<[1], [0], [0], [1], [0, 0, 1, 1], [], []>} : vector<256x3xbf16>, vector<3x8xbf16>, vector<256x8xf32> -> vector<256x8xf32>
    %8 = arith.addf %2, %7 : vector<256x8xf32>
    %9 = vector.extract_strided_slice %1 {offsets = [0, 1, 0], sizes = [16, 16, 3], strides = [1, 1, 1]} : vector<18x18x3xbf16> to vector<16x16x3xbf16>
    %10 = vector.shape_cast %9 : vector<16x16x3xbf16> to vector<256x3xbf16>
    %c1 = arith.constant 1 : index
    %c0_7 = arith.constant 0 : index
    %c0_8 = arith.constant 0 : index
    %11 = vector.load %arg2[%c1, %c0_7, %c0_8] : memref<9x3x8xbf16, #tpu.memory_space<vmem>>, vector<1x3x8xbf16>
    %12 = vector.shape_cast %11 : vector<1x3x8xbf16> to vector<3x8xbf16>
    %cst_9 = arith.constant dense<0.000000e+00> : vector<256x8xf32>
    %13 = tpu.matmul %10, %12, %cst_9 {dimension_numbers = #tpu.dot_dimension_numbers<[1], [0], [0], [1], [0, 0, 1, 1], [], []>} : vector<256x3xbf16>, vector<3x8xbf16>, vector<256x8xf32> -> vector<256x8xf32>
    %14 = arith.addf %8, %13 : vector<256x8xf32>
    %15 = vector.extract_strided_slice %1 {offsets = [0, 2, 0], sizes = [16, 16, 3], strides = [1, 1, 1]} : vector<18x18x3xbf16> to vector<16x16x3xbf16>
    %16 = vector.shape_cast %15 : vector<16x16x3xbf16> to vector<256x3xbf16>
    %c2 = arith.constant 2 : index
    %c0_10 = arith.constant 0 : index
    %c0_11 = arith.constant 0 : index
    %17 = vector.load %arg2[%c2, %c0_10, %c0_11] : memref<9x3x8xbf16, #tpu.memory_space<vmem>>, vector<1x3x8xbf16>
    %18 = vector.shape_cast %17 : vector<1x3x8xbf16> to vector<3x8xbf16>
    %cst_12 = arith.constant dense<0.000000e+00> : vector<256x8xf32>
    %19 = tpu.matmul %16, %18, %cst_12 {dimension_numbers = #tpu.dot_dimension_numbers<[1], [0], [0], [1], [0, 0, 1, 1], [], []>} : vector<256x3xbf16>, vector<3x8xbf16>, vector<256x8xf32> -> vector<256x8xf32>
    %20 = arith.addf %14, %19 : vector<256x8xf32>
    %21 = vector.extract_strided_slice %1 {offsets = [1, 0, 0], sizes = [16, 16, 3], strides = [1, 1, 1]} : vector<18x18x3xbf16> to vector<16x16x3xbf16>
    %22 = vector.shape_cast %21 : vector<16x16x3xbf16> to vector<256x3xbf16>
    %c3 = arith.constant 3 : index
    %c0_13 = arith.constant 0 : index
    %c0_14 = arith.constant 0 : index
    %23 = vector.load %arg2[%c3, %c0_13, %c0_14] : memref<9x3x8xbf16, #tpu.memory_space<vmem>>, vector<1x3x8xbf16>
    %24 = vector.shape_cast %23 : vector<1x3x8xbf16> to vector<3x8xbf16>
    %cst_15 = arith.constant dense<0.000000e+00> : vector<256x8xf32>
    %25 = tpu.matmul %22, %24, %cst_15 {dimension_numbers = #tpu.dot_dimension_numbers<[1], [0], [0], [1], [0, 0, 1, 1], [], []>} : vector<256x3xbf16>, vector<3x8xbf16>, vector<256x8xf32> -> vector<256x8xf32>
    %26 = arith.addf %20, %25 : vector<256x8xf32>
    %27 = vector.extract_strided_slice %1 {offsets = [1, 1, 0], sizes = [16, 16, 3], strides = [1, 1, 1]} : vector<18x18x3xbf16> to vector<16x16x3xbf16>
    %28 = vector.shape_cast %27 : vector<16x16x3xbf16> to vector<256x3xbf16>
    %c4 = arith.constant 4 : index
    %c0_16 = arith.constant 0 : index
    %c0_17 = arith.constant 0 : index
    %29 = vector.load %arg2[%c4, %c0_16, %c0_17] : memref<9x3x8xbf16, #tpu.memory_space<vmem>>, vector<1x3x8xbf16>
    %30 = vector.shape_cast %29 : vector<1x3x8xbf16> to vector<3x8xbf16>
    %cst_18 = arith.constant dense<0.000000e+00> : vector<256x8xf32>
    %31 = tpu.matmul %28, %30, %cst_18 {dimension_numbers = #tpu.dot_dimension_numbers<[1], [0], [0], [1], [0, 0, 1, 1], [], []>} : vector<256x3xbf16>, vector<3x8xbf16>, vector<256x8xf32> -> vector<256x8xf32>
    %32 = arith.addf %26, %31 : vector<256x8xf32>
    %33 = vector.extract_strided_slice %1 {offsets = [1, 2, 0], sizes = [16, 16, 3], strides = [1, 1, 1]} : vector<18x18x3xbf16> to vector<16x16x3xbf16>
    %34 = vector.shape_cast %33 : vector<16x16x3xbf16> to vector<256x3xbf16>
    %c5 = arith.constant 5 : index
    %c0_19 = arith.constant 0 : index
    %c0_20 = arith.constant 0 : index
    %35 = vector.load %arg2[%c5, %c0_19, %c0_20] : memref<9x3x8xbf16, #tpu.memory_space<vmem>>, vector<1x3x8xbf16>
    %36 = vector.shape_cast %35 : vector<1x3x8xbf16> to vector<3x8xbf16>
    %cst_21 = arith.constant dense<0.000000e+00> : vector<256x8xf32>
    %37 = tpu.matmul %34, %36, %cst_21 {dimension_numbers = #tpu.dot_dimension_numbers<[1], [0], [0], [1], [0, 0, 1, 1], [], []>} : vector<256x3xbf16>, vector<3x8xbf16>, vector<256x8xf32> -> vector<256x8xf32>
    %38 = arith.addf %32, %37 : vector<256x8xf32>
    %39 = vector.extract_strided_slice %1 {offsets = [2, 0, 0], sizes = [16, 16, 3], strides = [1, 1, 1]} : vector<18x18x3xbf16> to vector<16x16x3xbf16>
    %40 = vector.shape_cast %39 : vector<16x16x3xbf16> to vector<256x3xbf16>
    %c6 = arith.constant 6 : index
    %c0_22 = arith.constant 0 : index
    %c0_23 = arith.constant 0 : index
    %41 = vector.load %arg2[%c6, %c0_22, %c0_23] : memref<9x3x8xbf16, #tpu.memory_space<vmem>>, vector<1x3x8xbf16>
    %42 = vector.shape_cast %41 : vector<1x3x8xbf16> to vector<3x8xbf16>
    %cst_24 = arith.constant dense<0.000000e+00> : vector<256x8xf32>
    %43 = tpu.matmul %40, %42, %cst_24 {dimension_numbers = #tpu.dot_dimension_numbers<[1], [0], [0], [1], [0, 0, 1, 1], [], []>} : vector<256x3xbf16>, vector<3x8xbf16>, vector<256x8xf32> -> vector<256x8xf32>
    %44 = arith.addf %38, %43 : vector<256x8xf32>
    %45 = vector.extract_strided_slice %1 {offsets = [2, 1, 0], sizes = [16, 16, 3], strides = [1, 1, 1]} : vector<18x18x3xbf16> to vector<16x16x3xbf16>
    %46 = vector.shape_cast %45 : vector<16x16x3xbf16> to vector<256x3xbf16>
    %c7 = arith.constant 7 : index
    %c0_25 = arith.constant 0 : index
    %c0_26 = arith.constant 0 : index
    %47 = vector.load %arg2[%c7, %c0_25, %c0_26] : memref<9x3x8xbf16, #tpu.memory_space<vmem>>, vector<1x3x8xbf16>
    %48 = vector.shape_cast %47 : vector<1x3x8xbf16> to vector<3x8xbf16>
    %cst_27 = arith.constant dense<0.000000e+00> : vector<256x8xf32>
    %49 = tpu.matmul %46, %48, %cst_27 {dimension_numbers = #tpu.dot_dimension_numbers<[1], [0], [0], [1], [0, 0, 1, 1], [], []>} : vector<256x3xbf16>, vector<3x8xbf16>, vector<256x8xf32> -> vector<256x8xf32>
    %50 = arith.addf %44, %49 : vector<256x8xf32>
    %51 = vector.extract_strided_slice %1 {offsets = [2, 2, 0], sizes = [16, 16, 3], strides = [1, 1, 1]} : vector<18x18x3xbf16> to vector<16x16x3xbf16>
    %52 = vector.shape_cast %51 : vector<16x16x3xbf16> to vector<256x3xbf16>
    %c8 = arith.constant 8 : index
    %c0_28 = arith.constant 0 : index
    %c0_29 = arith.constant 0 : index
    %53 = vector.load %arg2[%c8, %c0_28, %c0_29] : memref<9x3x8xbf16, #tpu.memory_space<vmem>>, vector<1x3x8xbf16>
    %54 = vector.shape_cast %53 : vector<1x3x8xbf16> to vector<3x8xbf16>
    %cst_30 = arith.constant dense<0.000000e+00> : vector<256x8xf32>
    %55 = tpu.matmul %52, %54, %cst_30 {dimension_numbers = #tpu.dot_dimension_numbers<[1], [0], [0], [1], [0, 0, 1, 1], [], []>} : vector<256x3xbf16>, vector<3x8xbf16>, vector<256x8xf32> -> vector<256x8xf32>
    %56 = arith.addf %50, %55 : vector<256x8xf32>
    %c0_31 = arith.constant 0 : index
    %c0_32 = arith.constant 0 : index
    %57 = vector.load %arg3[%c0_31, %c0_32] : memref<1x8xf32, #tpu.memory_space<vmem>>, vector<1x8xf32>
    %58 = vector.broadcast %57 : vector<1x8xf32> to vector<256x8xf32>
    %59 = arith.addf %56, %58 : vector<256x8xf32>
    %cst_33 = arith.constant 0.000000e+00 : f32
    %60 = vector.broadcast %cst_33 : f32 to vector<256x8xf32>
    %61 = arith.maximumf %59, %60 : vector<256x8xf32>
    %62 = vector.shape_cast %61 : vector<256x8xf32> to vector<8x2x8x2x8xf32>
    %cst_34 = arith.constant dense<0xFF800000> : vector<8x8x8xf32>
    %63 = vector.multi_reduction <maximumf>, %62, %cst_34 [1, 3] : vector<8x2x8x2x8xf32> to vector<8x8x8xf32>
    %64 = arith.truncf %63 : vector<8x8x8xf32> to vector<8x8x8xbf16>
    %cst_35 = arith.constant 0.000000e+00 : bf16
    %65 = vector.broadcast %cst_35 : bf16 to vector<1x10x10x8xbf16>
    %c0_36 = arith.constant 0 : index
    %c0_37 = arith.constant 0 : index
    %c0_38 = arith.constant 0 : index
    %c0_39 = arith.constant 0 : index
    %66 = vector.load %arg4[%c0_36, %c0_37, %c0_38, %c0_39] : memref<1x10x10x8xbf16, #tpu.memory_space<vmem>>, vector<1x10x10x8xbf16>
    tpu.vector_store %arg4[%c0_36, %c0_37, %c0_38, %c0_39], %65 {strides = array<i32>} : memref<1x10x10x8xbf16, #tpu.memory_space<vmem>>, vector<1x10x10x8xbf16>,
    %c0_40 = arith.constant 0 : index
    %c1_41 = arith.constant 1 : index
    %c1_42 = arith.constant 1 : index
    %c0_43 = arith.constant 0 : index
    %67 = vector.load %arg4[%c0_40, %c1_41, %c1_42, %c0_43] : memref<1x10x10x8xbf16, #tpu.memory_space<vmem>>, vector<1x8x8x8xbf16>
    %68 = vector.shape_cast %67 : vector<1x8x8x8xbf16> to vector<8x8x8xbf16>
    %69 = vector.shape_cast %64 : vector<8x8x8xbf16> to vector<1x8x8x8xbf16>
    tpu.vector_store %arg4[%c0_40, %c1_41, %c1_42, %c0_43], %69 {strides = array<i32>} : memref<1x10x10x8xbf16, #tpu.memory_space<vmem>>, vector<1x8x8x8xbf16>,
    return
  }
  func.func @transform_0(%arg0: i32) -> (i32, i32, i32, i32) {
    %c0_i32 = arith.constant 0 : i32
    %c0_i32_0 = arith.constant 0 : i32
    %c0_i32_1 = arith.constant 0 : i32
    %c0_i32_2 = arith.constant 0 : i32
    return %arg0, %c0_i32, %c0_i32_0, %c0_i32_1 : i32, i32, i32, i32
  }
  func.func @transform_1(%arg0: i32) -> (i32, i32, i32) {
    %c0_i32 = arith.constant 0 : i32
    %c0_i32_0 = arith.constant 0 : i32
    %c0_i32_1 = arith.constant 0 : i32
    %c0_i32_2 = arith.constant 0 : i32
    return %c0_i32, %c0_i32_0, %c0_i32_1 : i32, i32, i32
  }
  func.func @transform_2(%arg0: i32) -> (i32, i32) {
    %c0_i32 = arith.constant 0 : i32
    %c0_i32_0 = arith.constant 0 : i32
    %c0_i32_1 = arith.constant 0 : i32
    return %c0_i32, %c0_i32_0 : i32, i32
  }
  func.func @transform_3(%arg0: i32) -> (i32, i32, i32, i32) {
    %c0_i32 = arith.constant 0 : i32
    %c0_i32_0 = arith.constant 0 : i32
    %c0_i32_1 = arith.constant 0 : i32
    %c0_i32_2 = arith.constant 0 : i32
    return %arg0, %c0_i32, %c0_i32_0, %c0_i32_1 : i32, i32, i32, i32
  }
}

</mosaic_0001>

<llo_original>
// kernel: tpu_custom_call.1
$region0: #{tpu_custom_call.1}
  #allocation0 [shape = 'u32[]', space=smem, size = 0x4, offset = 0x4, fixed_abs, tag = 'smem constant byte address 0x4 - core index']
  #allocation1 [shape = 'u32[72,128]{1,0:T(1,128)}', space=vmem, size = 0x9000, scoped, tag = 'internal scratch']
  %s0 = inlined_call_operand.vmem [shape: bf16[2,18,18,3], index: 0, kind: input, shape index: {}]
  %s1 = inlined_call_operand.vmem [shape: bf16[9,3,8], index: 1, kind: input, shape index: {}]
  %s2 = inlined_call_operand.vmem [shape: f32[1,8], index: 2, kind: input, shape index: {}]
  %s3 = inlined_call_operand.vmem [shape: bf16[2,10,10,8], index: 3, kind: output, shape index: {}]
  %s4 = sld [smem:[#allocation0]]
  $region45: #{tpu_custom_call.1} parent=0
    _
  %s6 = ssub.s32 1, %s4
  %s7 = scalar_select 0, %s6, %s4
  loop: start=0, step=1, limit=4
  $region2: #{tpu_custom_call.1} parent=0 // loop_pre_header
    _
  $region3: #{tpu_custom_call.1} parent=0 // loop_header
    %s9 = sphi 0, %s13
    %p10 = scmp.ge.s32.totalorder %s9, 4
    %s19 = sphi 0, %s21
    %s22 = sphi 0, %s19
    %s23 = sphi 0, %s22
    %s39 = sphi 0, %s23
    %s43 = sphi 0, %s43
    %s45 = sphi 0, %s43
    %s46 = sphi 0, %s45
    %s60 = sphi 0, %s46
    %s64 = sphi 0, %s64
    %s66 = sphi 0, %s64
    %s67 = sphi 0, %s66
    %s81 = sphi 0, %s67
    %s87 = sphi 0, %s89
    %s90 = sphi 0, %s87
    %s91 = sphi 0, %s90
    %s107 = sphi 0, %s91
  $region4: #{tpu_custom_call.1} parent=0 // loop_header_branch
    %12 = sbr.rel (%p10) target = $region8
  $region5: #{tpu_custom_call.1} parent=0 // loop_body
    %s14 = ssub.s32 %s9, 1
    %s15 = ssub.s32 %s9, 2
    %s16 = sadd.s32 %s9, 1
    %s17 = ssub.s32 %s9, %s16
    %p18 = scmp.eq.s32.totalorder %s17, 0
    %s20 = sadd.s32 %s19, 1
    %s21 = scalar_select %p18, %s19, %s20
    %p24 = pneg %p18
    %p25 = scmp.eq.s32.totalorder %s9, 1
    %p26 = por %p24, %p25
    %p27 = scmp.ne.s32.totalorder %s19, %s22
    %p28 = scmp.eq.s32.totalorder %s9, 0
    %p29 = por %p27, %p28
    %p30 = scmp.ne.s32.totalorder %s19, %s22
    %p31 = scmp.eq.s32.totalorder %s14, 1
    %p32 = por %p30, %p31
    %p33 = scmp.ne.s32.totalorder %s22, %s23
    %p34 = scmp.eq.s32.totalorder %s14, 0
    %p35 = por %p33, %p34
    %p36 = scmp.ne.s32.totalorder %s22, %s23
    %p37 = scmp.eq.s32.totalorder %s15, 1
    %p38 = por %p36, %p37
    %p40 = scmp.ne.s32.totalorder %s23, %s39
    %p41 = scmp.eq.s32.totalorder %s15, 0
    %p42 = por %p40, %p41
    %s44 = sadd.s32 %s43, 1
    %p47 = scmp.eq.s32.totalorder %s9, 1
    %p48 = scmp.ne.s32.totalorder %s43, %s45
    %p49 = scmp.eq.s32.totalorder %s9, 0
    %p50 = por %p48, %p49
    %p51 = scmp.ne.s32.totalorder %s43, %s45
    %p52 = scmp.eq.s32.totalorder %s14, 1
    %p53 = por %p51, %p52
    %p54 = scmp.ne.s32.totalorder %s45, %s46
    %p55 = scmp.eq.s32.totalorder %s14, 0
    %p56 = por %p54, %p55
    %p57 = scmp.ne.s32.totalorder %s45, %s46
    %p58 = scmp.eq.s32.totalorder %s15, 1
    %p59 = por %p57, %p58
    %p61 = scmp.ne.s32.totalorder %s46, %s60
    %p62 = scmp.eq.s32.totalorder %s15, 0
    %p63 = por %p61, %p62
    %s65 = sadd.s32 %s64, 1
    %p68 = scmp.eq.s32.totalorder %s9, 1
    %p69 = scmp.ne.s32.totalorder %s64, %s66
    %p70 = scmp.eq.s32.totalorder %s9, 0
    %p71 = por %p69, %p70
    %p72 = scmp.ne.s32.totalorder %s64, %s66
    %p73 = scmp.eq.s32.totalorder %s14, 1
    %p74 = por %p72, %p73
    %p75 = scmp.ne.s32.totalorder %s66, %s67
    %p76 = scmp.eq.s32.totalorder %s14, 0
    %p77 = por %p75, %p76
    %p78 = scmp.ne.s32.totalorder %s66, %s67
    %p79 = scmp.eq.s32.totalorder %s15, 1
    %p80 = por %p78, %p79
    %p82 = scmp.ne.s32.totalorder %s67, %s81
    %p83 = scmp.eq.s32.totalorder %s15, 0
    %p84 = por %p82, %p83
    %s85 = ssub.s32 %s9, %s16
    %p86 = scmp.eq.s32.totalorder %s85, 0
    %s88 = sadd.s32 %s87, 1
    %s89 = scalar_select %p86, %s87, %s88
    %p92 = pneg %p86
    %p93 = scmp.eq.s32.totalorder %s9, 1
    %p94 = por %p92, %p93
    %p95 = scmp.ne.s32.totalorder %s87, %s90
    %p96 = scmp.eq.s32.totalorder %s9, 0
    %p97 = por %p95, %p96
    %p98 = scmp.ne.s32.totalorder %s87, %s90
    %p99 = scmp.eq.s32.totalorder %s14, 1
    %p100 = por %p98, %p99
    %p101 = scmp.ne.s32.totalorder %s90, %s91
    %p102 = scmp.eq.s32.totalorder %s14, 0
    %p103 = por %p101, %p102
    %p104 = scmp.ne.s32.totalorder %s90, %s91
    %p105 = scmp.eq.s32.totalorder %s15, 1
    %p106 = por %p104, %p105
    %p108 = scmp.ne.s32.totalorder %s91, %s107
    %p109 = scmp.eq.s32.totalorder %s15, 0
    %p110 = por %p108, %p109
    %p111 = scmp.le.s32.totalorder 1, %s9
    %p112 = scmp.lt.s32.totalorder %s9, 3
    %p113 = pnand %p111, %p112
    %p114 = pneg %p113
    // Predicated region
    $region9: #{tpu_custom_call.1} parent=5 // pred_check
      _
    $region10: #{tpu_custom_call.1} parent=5 // pred_check_branch
      %116 = sbr.rel (%p113) target = $region12
    $region11: #{tpu_custom_call.1} parent=5 // pred_region
      %s117 = ssub.s32 %s9, 1
      // Predicated region
      $region13: #{tpu_custom_call.1} parent=11 // pred_check
        %p118 = pneg %p56
      $region14: #{tpu_custom_call.1} parent=11 // pred_check_branch
        %120 = sbr.rel (%p118) target = $region16
      $region15: #{tpu_custom_call.1} parent=11 // pred_region
        _
      $region16: #{tpu_custom_call.1} parent=11 // pred_fallthru
        _
      // Predicated region
      $region17: #{tpu_custom_call.1} parent=11 // pred_check
        %p121 = pneg %p77
      $region18: #{tpu_custom_call.1} parent=11 // pred_check_branch
        %123 = sbr.rel (%p121) target = $region20
      $region19: #{tpu_custom_call.1} parent=11 // pred_region
        _
      $region20: #{tpu_custom_call.1} parent=11 // pred_fallthru
        _
    $region12: #{tpu_custom_call.1} parent=5 // pred_fallthru
      _
    %p124 = scmp.lt.s32.totalorder %s9, 2
    // Predicated region
    $region21: #{tpu_custom_call.1} parent=5 // pred_check
      %p125 = pneg %p124
    $region22: #{tpu_custom_call.1} parent=5 // pred_check_branch
      %127 = sbr.rel (%p125) target = $region24
    $region23: #{tpu_custom_call.1} parent=5 // pred_region
      // Predicated region
      $region25: #{tpu_custom_call.1} parent=23 // pred_check
        %p128 = pneg %p29
      $region26: #{tpu_custom_call.1} parent=23 // pred_check_branch
        %130 = sbr.rel (%p128) target = $region28
      $region27: #{tpu_custom_call.1} parent=23 // pred_region
        %p131 = scmp.lt.s32.totalorder %s9, 1
        %s132 = scalar_select %p131, %s9, 1
        %s133 = smul.addr %s132, 54
        %s134 = smul.addr %s133, 4
        %s135 = scalar_lea.vmem %s0, %s134
      $region28: #{tpu_custom_call.1} parent=23 // pred_fallthru
        _
    $region24: #{tpu_custom_call.1} parent=5 // pred_fallthru
      _
    %p136 = scmp.le.s32.totalorder 1, %s9
    %p137 = scmp.lt.s32.totalorder %s9, 3
    %p138 = pnand %p136, %p137
    %p139 = pneg %p138
    // Predicated region
    $region29: #{tpu_custom_call.1} parent=5 // pred_check
      _
    $region30: #{tpu_custom_call.1} parent=5 // pred_check_branch
      %141 = sbr.rel (%p138) target = $region32
    $region31: #{tpu_custom_call.1} parent=5 // pred_region
      %s142 = ssub.s32 %s9, 1
      %p143 = scmp.lt.s32.totalorder %s14, 1
      %s144 = scalar_select %p143, %s14, 1
      %s145 = smul.addr %s144, 54
      %s146 = smul.addr %s145, 4
      %s147 = scalar_lea.vmem %s0, %s146
      %p148 = pneg %p35
      %p149 = pneg %p32
      %p150 = pneg %p56
      %p151 = pneg %p53
      %p152 = pneg %p77
      %p153 = pneg %p74
      %p154 = pneg %p103
      %p155 = pneg %p100
      %p156 = scmp.lt.s32.totalorder %s14, 1
      %s157 = scalar_select %p156, %s14, 1
      %s158 = smul.addr %s157, 20
      %s159 = smul.addr %s158, 4
      %s160 = scalar_lea.vmem %s3, %s159
      %p161 = scmp.lt.s32.totalorder %s14, 1
      %s162 = scalar_select %p161, %s14, 1
      %s163 = smul.addr %s162, 54
      %s164 = smul.addr %s163, 4
      %s165 = scalar_lea.vmem %s0, %s164
      %p166 = scmp.lt.s32.totalorder %s14, 1
      %s167 = scalar_select %p166, %s14, 1
      %s168 = smul.addr %s167, 20
      %s169 = smul.addr %s168, 4
      %s170 = scalar_lea.vmem %s3, %s169
      %v172 = vld [vmem:[%s165] sm:$0xf]
      %v173 = vld [vmem:[%s165 + $0x4] sm:$0xf]
      %v174 = vld [vmem:[%s165 + $0x8] sm:$0x1]
      %v175 = vld [vmem:[%s165 + $0xc] sm:$0xf]
      %v176 = vld [vmem:[%s165 + $0x10] sm:$0xf]
      %v177 = vld [vmem:[%s165 + $0x14] sm:$0x1]
      %v178 = vld [vmem:[%s165 + $0x18] sm:$0xf]
      %v179 = vld [vmem:[%s165 + $0x1c] sm:$0xf]
      %v180 = vld [vmem:[%s165 + $0x20] sm:$0x1]
      %v181 = vld [vmem:[%s165 + $0x24] sm:$0xf]
      %v182 = vld [vmem:[%s165 + $0x28] sm:$0xf]
      %v183 = vld [vmem:[%s165 + $0x2c] sm:$0x1]
      %v184 = vld [vmem:[%s165 + $0x30] sm:$0xf]
      %v185 = vld [vmem:[%s165 + $0x34] sm:$0xf]
      %v186 = vld [vmem:[%s165 + $0x38] sm:$0x1]
      %v187 = vld [vmem:[%s165 + $0x3c] sm:$0xf]
      %v188 = vld [vmem:[%s165 + $0x40] sm:$0xf]
      %v189 = vld [vmem:[%s165 + $0x44] sm:$0x1]
      %v190 = vld [vmem:[%s165 + $0x48] sm:$0xf]
      %v191 = vld [vmem:[%s165 + $0x4c] sm:$0xf]
      %v192 = vld [vmem:[%s165 + $0x50] sm:$0x1]
      %v193 = vld [vmem:[%s165 + $0x54] sm:$0xf]
      %v194 = vld [vmem:[%s165 + $0x58] sm:$0xf]
      %v195 = vld [vmem:[%s165 + $0x5c] sm:$0x1]
      %v196 = vld [vmem:[%s165 + $0x60] sm:$0xf]
      %v197 = vld [vmem:[%s165 + $0x64] sm:$0xf]
      %v198 = vld [vmem:[%s165 + $0x68] sm:$0x1]
      %v199 = vld [vmem:[%s165 + $0x6c] sm:$0xf]
      %v200 = vld [vmem:[%s165 + $0x70] sm:$0xf]
      %v201 = vld [vmem:[%s165 + $0x74] sm:$0x1]
      %v202 = vld [vmem:[%s165 + $0x78] sm:$0xf]
      %v203 = vld [vmem:[%s165 + $0x7c] sm:$0xf]
      %v204 = vld [vmem:[%s165 + $0x80] sm:$0x1]
      %v205 = vld [vmem:[%s165 + $0x84] sm:$0xf]
      %v206 = vld [vmem:[%s165 + $0x88] sm:$0xf]
      %v207 = vld [vmem:[%s165 + $0x8c] sm:$0x1]
      %v208 = vld [vmem:[%s165 + $0x90] sm:$0xf]
      %v209 = vld [vmem:[%s165 + $0x94] sm:$0xf]
      %v210 = vld [vmem:[%s165 + $0x98] sm:$0x1]
      %v211 = vld [vmem:[%s165 + $0x9c] sm:$0xf]
      %v212 = vld [vmem:[%s165 + $0xa0] sm:$0xf]
      %v213 = vld [vmem:[%s165 + $0xa4] sm:$0x1]
      %v214 = vld [vmem:[%s165 + $0xa8] sm:$0xf]
      %v215 = vld [vmem:[%s165 + $0xac] sm:$0xf]
      %v216 = vld [vmem:[%s165 + $0xb0] sm:$0x1]
      %v217 = vld [vmem:[%s165 + $0xb4] sm:$0xf]
      %v218 = vld [vmem:[%s165 + $0xb8] sm:$0xf]
      %v219 = vld [vmem:[%s165 + $0xbc] sm:$0x1]
      %v220 = vld [vmem:[%s165 + $0xc0] sm:$0xf]
      %v221 = vld [vmem:[%s165 + $0xc4] sm:$0xf]
      %v222 = vld [vmem:[%s165 + $0xc8] sm:$0x1]
      %v223 = vld [vmem:[%s165 + $0xcc] sm:$0xf]
      %v224 = vld [vmem:[%s165 + $0xd0] sm:$0xf]
      %v225 = vld [vmem:[%s165 + $0xd4] sm:$0x1]
      %v226 = vld [vmem:[%s1] sm:$0x3]
      %vm227 = vsmask.f32 3328
      %vm228 = vsmask.f32 7440
      %vm229 = vmor %vm227, %vm228
      %v231 = vshrl.u32 %v172, 16
      %v233 = vrot.slane %v231, 4
      %v234 = vshll.u32 %v172, 16
      %v236 = vrot.slane %v234, 5
      %v237 = vor.u32 %v233, %v236
      %v238 = vrot.slane %v237, 4
      %v240 = vshll.u32 %v173, 16
      %v242 = vrot.slane %v240, 5
      %v243 = vsel %vm229, %v238, %v242
      %v244 = vshrl.u32 %v173, 16
      %v246 = vrot.slane %v244, 4
      %v247 = vor.u32 %v246, %v242
      %v248 = vrot.slane %v247, 4
      %v250 = vshll.u32 %v174, 16
      %v252 = vrot.slane %v250, 5
      %v253 = vsel %vm229, %v248, %v252
      %v255 = vshrl.u32 %v175, 16
      %v257 = vrot.slane %v255, 4
      %v258 = vshll.u32 %v175, 16
      %v260 = vrot.slane %v258, 5
      %v261 = vor.u32 %v257, %v260
      %v262 = vrot.slane %v261, 4
      %v264 = vshll.u32 %v176, 16
      %v266 = vrot.slane %v264, 5
      %v267 = vsel %vm229, %v262, %v266
      %v268 = vshrl.u32 %v176, 16
      %v270 = vrot.slane %v268, 4
      %v271 = vor.u32 %v270, %v266
      %v272 = vrot.slane %v271, 4
      %v274 = vshll.u32 %v177, 16
      %v276 = vrot.slane %v274, 5
      %v277 = vsel %vm229, %v272, %v276
      %v279 = vshrl.u32 %v178, 16
      %v281 = vrot.slane %v279, 4
      %v282 = vshll.u32 %v178, 16
      %v284 = vrot.slane %v282, 5
      %v285 = vor.u32 %v281, %v284
      %v286 = vrot.slane %v285, 4
      %v288 = vshll.u32 %v179, 16
      %v290 = vrot.slane %v288, 5
      %v291 = vsel %vm229, %v286, %v290
      %v292 = vshrl.u32 %v179, 16
      %v294 = vrot.slane %v292, 4
      %v295 = vor.u32 %v294, %v290
      %v296 = vrot.slane %v295, 4
      %v298 = vshll.u32 %v180, 16
      %v300 = vrot.slane %v298, 5
      %v301 = vsel %vm229, %v296, %v300
      %v303 = vshrl.u32 %v181, 16
      %v305 = vrot.slane %v303, 4
      %v306 = vshll.u32 %v181, 16
      %v308 = vrot.slane %v306, 5
      %v309 = vor.u32 %v305, %v308
      %v310 = vrot.slane %v309, 4
      %v312 = vshll.u32 %v182, 16
      %v314 = vrot.slane %v312, 5
      %v315 = vsel %vm229, %v310, %v314
      %v316 = vshrl.u32 %v182, 16
      %v318 = vrot.slane %v316, 4
      %v319 = vor.u32 %v318, %v314
      %v320 = vrot.slane %v319, 4
      %v322 = vshll.u32 %v183, 16
      %v324 = vrot.slane %v322, 5
      %v325 = vsel %vm229, %v320, %v324
      %v327 = vshrl.u32 %v184, 16
      %v329 = vrot.slane %v327, 4
      %v330 = vshll.u32 %v184, 16
      %v332 = vrot.slane %v330, 5
      %v333 = vor.u32 %v329, %v332
      %v334 = vrot.slane %v333, 4
      %v336 = vshll.u32 %v185, 16
      %v338 = vrot.slane %v336, 5
      %v339 = vsel %vm229, %v334, %v338
      %v340 = vshrl.u32 %v185, 16
      %v342 = vrot.slane %v340, 4
      %v343 = vor.u32 %v342, %v338
      %v344 = vrot.slane %v343, 4
      %v346 = vshll.u32 %v186, 16
      %v348 = vrot.slane %v346, 5
      %v349 = vsel %vm229, %v344, %v348
      %v351 = vshrl.u32 %v187, 16
      %v353 = vrot.slane %v351, 4
      %v354 = vshll.u32 %v187, 16
      %v356 = vrot.slane %v354, 5
      %v357 = vor.u32 %v353, %v356
      %v358 = vrot.slane %v357, 4
      %v360 = vshll.u32 %v188, 16
      %v362 = vrot.slane %v360, 5
      %v363 = vsel %vm229, %v358, %v362
      %v364 = vshrl.u32 %v188, 16
      %v366 = vrot.slane %v364, 4
      %v367 = vor.u32 %v366, %v362
      %v368 = vrot.slane %v367, 4
      %v370 = vshll.u32 %v189, 16
      %v372 = vrot.slane %v370, 5
      %v373 = vsel %vm229, %v368, %v372
      %v375 = vshrl.u32 %v190, 16
      %v377 = vrot.slane %v375, 4
      %v378 = vshll.u32 %v190, 16
      %v380 = vrot.slane %v378, 5
      %v381 = vor.u32 %v377, %v380
      %v382 = vrot.slane %v381, 4
      %v384 = vshll.u32 %v191, 16
      %v386 = vrot.slane %v384, 5
      %v387 = vsel %vm229, %v382, %v386
      %v388 = vshrl.u32 %v191, 16
      %v390 = vrot.slane %v388, 4
      %v391 = vor.u32 %v390, %v386
      %v392 = vrot.slane %v391, 4
      %v394 = vshll.u32 %v192, 16
      %v396 = vrot.slane %v394, 5
      %v397 = vsel %vm229, %v392, %v396
      %v399 = vshrl.u32 %v193, 16
      %v401 = vrot.slane %v399, 4
      %v402 = vshll.u32 %v193, 16
      %v404 = vrot.slane %v402, 5
      %v405 = vor.u32 %v401, %v404
      %v406 = vrot.slane %v405, 4
      %v408 = vshll.u32 %v194, 16
      %v410 = vrot.slane %v408, 5
      %v411 = vsel %vm229, %v406, %v410
      %v412 = vshrl.u32 %v194, 16
      %v414 = vrot.slane %v412, 4
      %v415 = vor.u32 %v414, %v410
      %v416 = vrot.slane %v415, 4
      %v418 = vshll.u32 %v195, 16
      %v420 = vrot.slane %v418, 5
      %v421 = vsel %vm229, %v416, %v420
      %v423 = vshrl.u32 %v196, 16
      %v425 = vrot.slane %v423, 4
      %v426 = vshll.u32 %v196, 16
      %v428 = vrot.slane %v426, 5
      %v429 = vor.u32 %v425, %v428
      %v430 = vrot.slane %v429, 4
      %v432 = vshll.u32 %v197, 16
      %v434 = vrot.slane %v432, 5
      %v435 = vsel %vm229, %v430, %v434
      %v436 = vshrl.u32 %v197, 16
      %v438 = vrot.slane %v436, 4
      %v439 = vor.u32 %v438, %v434
      %v440 = vrot.slane %v439, 4
      %v442 = vshll.u32 %v198, 16
      %v444 = vrot.slane %v442, 5
      %v445 = vsel %vm229, %v440, %v444
      %v447 = vshrl.u32 %v199, 16
      %v449 = vrot.slane %v447, 4
      %v450 = vshll.u32 %v199, 16
      %v452 = vrot.slane %v450, 5
      %v453 = vor.u32 %v449, %v452
      %v454 = vrot.slane %v453, 4
      %v456 = vshll.u32 %v200, 16
      %v458 = vrot.slane %v456, 5
      %v459 = vsel %vm229, %v454, %v458
      %v460 = vshrl.u32 %v200, 16
      %v462 = vrot.slane %v460, 4
      %v463 = vor.u32 %v462, %v458
      %v464 = vrot.slane %v463, 4
      %v466 = vshll.u32 %v201, 16
      %v468 = vrot.slane %v466, 5
      %v469 = vsel %vm229, %v464, %v468
      %v471 = vshrl.u32 %v202, 16
      %v473 = vrot.slane %v471, 4
      %v474 = vshll.u32 %v202, 16
      %v476 = vrot.slane %v474, 5
      %v477 = vor.u32 %v473, %v476
      %v478 = vrot.slane %v477, 4
      %v480 = vshll.u32 %v203, 16
      %v482 = vrot.slane %v480, 5
      %v483 = vsel %vm229, %v478, %v482
      %v484 = vshrl.u32 %v203, 16
      %v486 = vrot.slane %v484, 4
      %v487 = vor.u32 %v486, %v482
      %v488 = vrot.slane %v487, 4
      %v490 = vshll.u32 %v204, 16
      %v492 = vrot.slane %v490, 5
      %v493 = vsel %vm229, %v488, %v492
      %v495 = vshrl.u32 %v205, 16
      %v497 = vrot.slane %v495, 4
      %v498 = vshll.u32 %v205, 16
      %v500 = vrot.slane %v498, 5
      %v501 = vor.u32 %v497, %v500
      %v502 = vrot.slane %v501, 4
      %v504 = vshll.u32 %v206, 16
      %v506 = vrot.slane %v504, 5
      %v507 = vsel %vm229, %v502, %v506
      %v508 = vshrl.u32 %v206, 16
      %v510 = vrot.slane %v508, 4
      %v511 = vor.u32 %v510, %v506
      %v512 = vrot.slane %v511, 4
      %v514 = vshll.u32 %v207, 16
      %v516 = vrot.slane %v514, 5
      %v517 = vsel %vm229, %v512, %v516
      %v519 = vshrl.u32 %v208, 16
      %v521 = vrot.slane %v519, 4
      %v522 = vshll.u32 %v208, 16
      %v524 = vrot.slane %v522, 5
      %v525 = vor.u32 %v521, %v524
      %v526 = vrot.slane %v525, 4
      %v528 = vshll.u32 %v209, 16
      %v530 = vrot.slane %v528, 5
      %v531 = vsel %vm229, %v526, %v530
      %v532 = vshrl.u32 %v209, 16
      %v534 = vrot.slane %v532, 4
      %v535 = vor.u32 %v534, %v530
      %v536 = vrot.slane %v535, 4
      %v538 = vshll.u32 %v210, 16
      %v540 = vrot.slane %v538, 5
      %v541 = vsel %vm229, %v536, %v540
      %v543 = vshrl.u32 %v211, 16
      %v545 = vrot.slane %v543, 4
      %v546 = vshll.u32 %v211, 16
      %v548 = vrot.slane %v546, 5
      %v549 = vor.u32 %v545, %v548
      %v550 = vrot.slane %v549, 4
      %v552 = vshll.u32 %v212, 16
      %v554 = vrot.slane %v552, 5
      %v555 = vsel %vm229, %v550, %v554
      %v556 = vshrl.u32 %v212, 16
      %v558 = vrot.slane %v556, 4
      %v559 = vor.u32 %v558, %v554
      %v560 = vrot.slane %v559, 4
      %v562 = vshll.u32 %v213, 16
      %v564 = vrot.slane %v562, 5
      %v565 = vsel %vm229, %v560, %v564
      %v567 = vshrl.u32 %v214, 16
      %v569 = vrot.slane %v567, 4
      %v570 = vshll.u32 %v214, 16
      %v572 = vrot.slane %v570, 5
      %v573 = vor.u32 %v569, %v572
      %v574 = vrot.slane %v573, 4
      %v576 = vshll.u32 %v215, 16
      %v578 = vrot.slane %v576, 5
      %v579 = vsel %vm229, %v574, %v578
      %v580 = vshrl.u32 %v215, 16
      %v582 = vrot.slane %v580, 4
      %v583 = vor.u32 %v582, %v578
      %v584 = vrot.slane %v583, 4
      %v586 = vshll.u32 %v216, 16
      %v588 = vrot.slane %v586, 5
      %v589 = vsel %vm229, %v584, %v588
      %v591 = vshrl.u32 %v217, 16
      %v593 = vrot.slane %v591, 4
      %v594 = vshll.u32 %v217, 16
      %v596 = vrot.slane %v594, 5
      %v597 = vor.u32 %v593, %v596
      %v598 = vrot.slane %v597, 4
      %v600 = vshll.u32 %v218, 16
      %v602 = vrot.slane %v600, 5
      %v603 = vsel %vm229, %v598, %v602
      %v604 = vshrl.u32 %v218, 16
      %v606 = vrot.slane %v604, 4
      %v607 = vor.u32 %v606, %v602
      %v608 = vrot.slane %v607, 4
      %v610 = vshll.u32 %v219, 16
      %v612 = vrot.slane %v610, 5
      %v613 = vsel %vm229, %v608, %v612
      %s614 = scalar_lea.vmem %s1, 2
      %v615 = vld [vmem:[%s614] sm:$0x3]
      %v616 = vunpack.c.l.b16 %v243
      %v617 = vunpack.c.l.b16 %v253
      %v618 = vunpack.c.l.b16 %v267
      %v619 = vunpack.c.l.b16 %v277
      %v620 = vunpack.c.l.b16 %v291
      %v621 = vunpack.c.l.b16 %v301
      %v622 = vunpack.c.l.b16 %v315
      %v623 = vunpack.c.l.b16 %v325
      %v624 = vunpack.c.l.b16 %v339
      %v625 = vunpack.c.l.b16 %v349
      %v626 = vunpack.c.l.b16 %v363
      %v627 = vunpack.c.l.b16 %v373
      %v628 = vunpack.c.l.b16 %v387
      %v629 = vunpack.c.l.b16 %v397
      %v630 = vunpack.c.l.b16 %v411
      %v631 = vunpack.c.l.b16 %v421
      %v632 = vunpack.c.l.b16 %v435
      %v633 = vunpack.c.l.b16 %v445
      %v634 = vunpack.c.l.b16 %v459
      %v635 = vunpack.c.l.b16 %v469
      %v636 = vunpack.c.l.b16 %v483
      %v637 = vunpack.c.l.b16 %v493
      %v638 = vunpack.c.l.b16 %v507
      %v639 = vunpack.c.l.b16 %v517
      %v640 = vunpack.c.l.b16 %v531
      %v641 = vunpack.c.l.b16 %v541
      %v642 = vunpack.c.l.b16 %v555
      %v643 = vunpack.c.l.b16 %v565
      %v644 = vunpack.c.l.b16 %v579
      %v645 = vunpack.c.l.b16 %v589
      %v646 = vunpack.c.l.b16 %v603
      %v647 = vunpack.c.l.b16 %v613
      %v648 = vpack.c.b16 %v617, %v616
      %v649 = vpack.c.b16 %v619, %v618
      %v650 = vpack.c.b16 %v621, %v620
      %v651 = vpack.c.b16 %v623, %v622
      %v652 = vpack.c.b16 %v625, %v624
      %v653 = vpack.c.b16 %v627, %v626
      %v654 = vpack.c.b16 %v629, %v628
      %v655 = vpack.c.b16 %v631, %v630
      %v656 = vpack.c.b16 %v633, %v632
      %v657 = vpack.c.b16 %v635, %v634
      %v658 = vpack.c.b16 %v637, %v636
      %v659 = vpack.c.b16 %v639, %v638
      %v660 = vpack.c.b16 %v641, %v640
      %v661 = vpack.c.b16 %v643, %v642
      %v662 = vpack.c.b16 %v645, %v644
      %v663 = vpack.c.b16 %v647, %v646
      %vm664 = vcmask 23552
      %v666 = vsel %vm664, %v648, 0
      %v669 = vsel %vm664, %v649, 0
      %v672 = vsel %vm664, %v650, 0
      %v675 = vsel %vm664, %v651, 0
      %v678 = vsel %vm664, %v652, 0
      %v681 = vsel %vm664, %v653, 0
      %v684 = vsel %vm664, %v654, 0
      %v687 = vsel %vm664, %v655, 0
      %v690 = vsel %vm664, %v656, 0
      %v693 = vsel %vm664, %v657, 0
      %v696 = vsel %vm664, %v658, 0
      %v699 = vsel %vm664, %v659, 0
      %v702 = vsel %vm664, %v660, 0
      %v705 = vsel %vm664, %v661, 0
      %v708 = vsel %vm664, %v662, 0
      %v711 = vsel %vm664, %v663, 0
      %vm713 = vcmask 1040384
      %vm714 = vcmask 1041408
      %v715 = vsel %vm713, 4294967295, 65535
      %v716 = vsel %vm714, %v715, 0
      %v718 = vand.u32 %v615, %v716
      %720 = vmatpush.bf16.msra.mxu0 0
      %721 = vmatpush.bf16.msra.mxu0 0
      %722 = vmatpush.bf16.msra.mxu0 0
      %723 = vmatpush.bf16.msra.mxu0 0
      %724 = vmatpush.bf16.msra.mxu0 0
      %725 = vmatpush.bf16.msra.mxu0 0
      %726 = vmatpush.bf16.msra.mxu0 0
      %727 = vmatpush.bf16.msra.mxu0 %v718
      %728 = vmatmul.bf16.gmra.mxu0 %v666
      %v729 = vpop.f32.mrf.mxu0
      %v730 = vadd.f32 0.0, %v729
      %v731 = vpop.f32.mrf.mxu0
      %v732 = vadd.f32 0.0, %v731
      %733 = vmatmul.bf16.gmra.mxu0 %v669
      %v734 = vpop.f32.mrf.mxu0
      %v735 = vadd.f32 0.0, %v734
      %v736 = vpop.f32.mrf.mxu0
      %v737 = vadd.f32 0.0, %v736
      %738 = vmatmul.bf16.gmra.mxu0 %v672
      %v739 = vpop.f32.mrf.mxu0
      %v740 = vadd.f32 0.0, %v739
      %v741 = vpop.f32.mrf.mxu0
      %v742 = vadd.f32 0.0, %v741
      %743 = vmatmul.bf16.gmra.mxu0 %v675
      %v744 = vpop.f32.mrf.mxu0
      %v745 = vadd.f32 0.0, %v744
      %v746 = vpop.f32.mrf.mxu0
      %v747 = vadd.f32 0.0, %v746
      %748 = vmatmul.bf16.gmra.mxu0 %v678
      %v749 = vpop.f32.mrf.mxu0
      %v750 = vadd.f32 0.0, %v749
      %v751 = vpop.f32.mrf.mxu0
      %v752 = vadd.f32 0.0, %v751
      %753 = vmatmul.bf16.gmra.mxu0 %v681
      %v754 = vpop.f32.mrf.mxu0
      %v755 = vadd.f32 0.0, %v754
      %v756 = vpop.f32.mrf.mxu0
      %v757 = vadd.f32 0.0, %v756
      %758 = vmatmul.bf16.gmra.mxu0 %v684
      %v759 = vpop.f32.mrf.mxu0
      %v760 = vadd.f32 0.0, %v759
      %v761 = vpop.f32.mrf.mxu0
      %v762 = vadd.f32 0.0, %v761
      %763 = vmatmul.bf16.gmra.mxu0 %v687
      %v764 = vpop.f32.mrf.mxu0
      %v765 = vadd.f32 0.0, %v764
      %v766 = vpop.f32.mrf.mxu0
      %v767 = vadd.f32 0.0, %v766
      %768 = vmatmul.bf16.gmra.mxu0 %v690
      %v769 = vpop.f32.mrf.mxu0
      %v770 = vadd.f32 0.0, %v769
      %v771 = vpop.f32.mrf.mxu0
      %v772 = vadd.f32 0.0, %v771
      %773 = vmatmul.bf16.gmra.mxu0 %v693
      %v774 = vpop.f32.mrf.mxu0
      %v775 = vadd.f32 0.0, %v774
      %v776 = vpop.f32.mrf.mxu0
      %v777 = vadd.f32 0.0, %v776
      %778 = vmatmul.bf16.gmra.mxu0 %v696
      %v779 = vpop.f32.mrf.mxu0
      %v780 = vadd.f32 0.0, %v779
      %v781 = vpop.f32.mrf.mxu0
      %v782 = vadd.f32 0.0, %v781
      %783 = vmatmul.bf16.gmra.mxu0 %v699
      %v784 = vpop.f32.mrf.mxu0
      %v785 = vadd.f32 0.0, %v784
      %v786 = vpop.f32.mrf.mxu0
      %v787 = vadd.f32 0.0, %v786
      %788 = vmatmul.bf16.gmra.mxu0 %v702
      %v789 = vpop.f32.mrf.mxu0
      %v790 = vadd.f32 0.0, %v789
      %v791 = vpop.f32.mrf.mxu0
      %v792 = vadd.f32 0.0, %v791
      %793 = vmatmul.bf16.gmra.mxu0 %v705
      %v794 = vpop.f32.mrf.mxu0
      %v795 = vadd.f32 0.0, %v794
      %v796 = vpop.f32.mrf.mxu0
      %v797 = vadd.f32 0.0, %v796
      %798 = vmatmul.bf16.gmra.mxu0 %v708
      %v799 = vpop.f32.mrf.mxu0
      %v800 = vadd.f32 0.0, %v799
      %v801 = vpop.f32.mrf.mxu0
      %v802 = vadd.f32 0.0, %v801
      %803 = vmatmul.bf16.gmra.mxu0 %v711
      %v804 = vpop.f32.mrf.mxu0
      %v805 = vadd.f32 0.0, %v804
      %v806 = vpop.f32.mrf.mxu0
      %v807 = vadd.f32 0.0, %v806
      %808 = vdwg.mxu0
      %v841 = vunpack.c.l.b16 %v172
      %v842 = vunpack.c.l.b16 %v173
      %v843 = vunpack.c.l.b16 %v175
      %v844 = vunpack.c.l.b16 %v176
      %v845 = vunpack.c.l.b16 %v178
      %v846 = vunpack.c.l.b16 %v179
      %v847 = vunpack.c.l.b16 %v181
      %v848 = vunpack.c.l.b16 %v182
      %v849 = vunpack.c.l.b16 %v184
      %v850 = vunpack.c.l.b16 %v185
      %v851 = vunpack.c.l.b16 %v187
      %v852 = vunpack.c.l.b16 %v188
      %v853 = vunpack.c.l.b16 %v190
      %v854 = vunpack.c.l.b16 %v191
      %v855 = vunpack.c.l.b16 %v193
      %v856 = vunpack.c.l.b16 %v194
      %v857 = vunpack.c.l.b16 %v196
      %v858 = vunpack.c.l.b16 %v197
      %v859 = vunpack.c.l.b16 %v199
      %v860 = vunpack.c.l.b16 %v200
      %v861 = vunpack.c.l.b16 %v202
      %v862 = vunpack.c.l.b16 %v203
      %v863 = vunpack.c.l.b16 %v205
      %v864 = vunpack.c.l.b16 %v206
      %v865 = vunpack.c.l.b16 %v208
      %v866 = vunpack.c.l.b16 %v209
      %v867 = vunpack.c.l.b16 %v211
      %v868 = vunpack.c.l.b16 %v212
      %v869 = vunpack.c.l.b16 %v214
      %v870 = vunpack.c.l.b16 %v215
      %v871 = vunpack.c.l.b16 %v217
      %v872 = vunpack.c.l.b16 %v218
      %v873 = vpack.c.b16 %v842, %v841
      %v874 = vpack.c.b16 %v844, %v843
      %v875 = vpack.c.b16 %v846, %v845
      %v876 = vpack.c.b16 %v848, %v847
      %v877 = vpack.c.b16 %v850, %v849
      %v878 = vpack.c.b16 %v852, %v851
      %v879 = vpack.c.b16 %v854, %v853
      %v880 = vpack.c.b16 %v856, %v855
      %v881 = vpack.c.b16 %v858, %v857
      %v882 = vpack.c.b16 %v860, %v859
      %v883 = vpack.c.b16 %v862, %v861
      %v884 = vpack.c.b16 %v864, %v863
      %v885 = vpack.c.b16 %v866, %v865
      %v886 = vpack.c.b16 %v868, %v867
      %v887 = vpack.c.b16 %v870, %v869
      %v888 = vpack.c.b16 %v872, %v871
      %v890 = vsel %vm664, %v873, 0
      %v893 = vsel %vm664, %v874, 0
      %v896 = vsel %vm664, %v875, 0
      %v899 = vsel %vm664, %v876, 0
      %v902 = vsel %vm664, %v877, 0
      %v905 = vsel %vm664, %v878, 0
      %v908 = vsel %vm664, %v879, 0
      %v911 = vsel %vm664, %v880, 0
      %v914 = vsel %vm664, %v881, 0
      %v917 = vsel %vm664, %v882, 0
      %v920 = vsel %vm664, %v883, 0
      %v923 = vsel %vm664, %v884, 0
      %v926 = vsel %vm664, %v885, 0
      %v929 = vsel %vm664, %v886, 0
      %v932 = vsel %vm664, %v887, 0
      %v935 = vsel %vm664, %v888, 0
      %v938 = vand.u32 %v226, %v716
      %940 = vmatpush.bf16.msra.mxu0 0
      %941 = vmatpush.bf16.msra.mxu0 0
      %942 = vmatpush.bf16.msra.mxu0 0
      %943 = vmatpush.bf16.msra.mxu0 0
      %944 = vmatpush.bf16.msra.mxu0 0
      %945 = vmatpush.bf16.msra.mxu0 0
      %946 = vmatpush.bf16.msra.mxu0 0
      %947 = vmatpush.bf16.msra.mxu0 %v938
      %948 = vmatmul.bf16.gmra.mxu0 %v890
      %v949 = vpop.f32.mrf.mxu0
      %v950 = vadd.f32 %v730, %v949
      %v951 = vpop.f32.mrf.mxu0
      %v952 = vadd.f32 %v732, %v951
      %953 = vmatmul.bf16.gmra.mxu0 %v893
      %v954 = vpop.f32.mrf.mxu0
      %v955 = vadd.f32 %v735, %v954
      %v956 = vpop.f32.mrf.mxu0
      %v957 = vadd.f32 %v737, %v956
      %958 = vmatmul.bf16.gmra.mxu0 %v896
      %v959 = vpop.f32.mrf.mxu0
      %v960 = vadd.f32 %v740, %v959
      %v961 = vpop.f32.mrf.mxu0
      %v962 = vadd.f32 %v742, %v961
      %963 = vmatmul.bf16.gmra.mxu0 %v899
      %v964 = vpop.f32.mrf.mxu0
      %v965 = vadd.f32 %v745, %v964
      %v966 = vpop.f32.mrf.mxu0
      %v967 = vadd.f32 %v747, %v966
      %968 = vmatmul.bf16.gmra.mxu0 %v902
      %v969 = vpop.f32.mrf.mxu0
      %v970 = vadd.f32 %v750, %v969
      %v971 = vpop.f32.mrf.mxu0
      %v972 = vadd.f32 %v752, %v971
      %973 = vmatmul.bf16.gmra.mxu0 %v905
      %v974 = vpop.f32.mrf.mxu0
      %v975 = vadd.f32 %v755, %v974
      %v976 = vpop.f32.mrf.mxu0
      %v977 = vadd.f32 %v757, %v976
      %978 = vmatmul.bf16.gmra.mxu0 %v908
      %v979 = vpop.f32.mrf.mxu0
      %v980 = vadd.f32 %v760, %v979
      %v981 = vpop.f32.mrf.mxu0
      %v982 = vadd.f32 %v762, %v981
      %983 = vmatmul.bf16.gmra.mxu0 %v911
      %v984 = vpop.f32.mrf.mxu0
      %v985 = vadd.f32 %v765, %v984
      %v986 = vpop.f32.mrf.mxu0
      %v987 = vadd.f32 %v767, %v986
      %988 = vmatmul.bf16.gmra.mxu0 %v914
      %v989 = vpop.f32.mrf.mxu0
      %v990 = vadd.f32 %v770, %v989
      %v991 = vpop.f32.mrf.mxu0
      %v992 = vadd.f32 %v772, %v991
      %993 = vmatmul.bf16.gmra.mxu0 %v917
      %v994 = vpop.f32.mrf.mxu0
      %v995 = vadd.f32 %v775, %v994
      %v996 = vpop.f32.mrf.mxu0
      %v997 = vadd.f32 %v777, %v996
      %998 = vmatmul.bf16.gmra.mxu0 %v920
      %v999 = vpop.f32.mrf.mxu0
      %v1000 = vadd.f32 %v780, %v999
      %v1001 = vpop.f32.mrf.mxu0
      %v1002 = vadd.f32 %v782, %v1001
      %1003 = vmatmul.bf16.gmra.mxu0 %v923
      %v1004 = vpop.f32.mrf.mxu0
      %v1005 = vadd.f32 %v785, %v1004
      %v1006 = vpop.f32.mrf.mxu0
      %v1007 = vadd.f32 %v787, %v1006
      %1008 = vmatmul.bf16.gmra.mxu0 %v926
      %v1009 = vpop.f32.mrf.mxu0
      %v1010 = vadd.f32 %v790, %v1009
      %v1011 = vpop.f32.mrf.mxu0
      %v1012 = vadd.f32 %v792, %v1011
      %1013 = vmatmul.bf16.gmra.mxu0 %v929
      %v1014 = vpop.f32.mrf.mxu0
      %v1015 = vadd.f32 %v795, %v1014
      %v1016 = vpop.f32.mrf.mxu0
      %v1017 = vadd.f32 %v797, %v1016
      %1018 = vmatmul.bf16.gmra.mxu0 %v932
      %v1019 = vpop.f32.mrf.mxu0
      %v1020 = vadd.f32 %v800, %v1019
      %v1021 = vpop.f32.mrf.mxu0
      %v1022 = vadd.f32 %v802, %v1021
      %1023 = vmatmul.bf16.gmra.mxu0 %v935
      %v1024 = vpop.f32.mrf.mxu0
      %v1025 = vadd.f32 %v805, %v1024
      %v1026 = vpop.f32.mrf.mxu0
      %v1027 = vadd.f32 %v807, %v1026
      %1028 = vdwg.mxu0
      %vm1045 = vcmask 1042432
      %vm1046 = vcmask 1046532
      %vm1047 = vmor %vm1045, %vm1046
      %v1048 = vrot.slane %v172, 5
      %v1049 = vrot.slane %v1048, 4
      %v1050 = vrot.slane %v173, 5
      %v1051 = vsel %vm1047, %v1049, %v1050
      %v1052 = vrot.slane %v1050, 4
      %v1053 = vrot.slane %v174, 5
      %v1054 = vsel %vm1047, %v1052, %v1053
      %v1055 = vrot.slane %v175, 5
      %v1056 = vrot.slane %v1055, 4
      %v1057 = vrot.slane %v176, 5
      %v1058 = vsel %vm1047, %v1056, %v1057
      %v1059 = vrot.slane %v1057, 4
      %v1060 = vrot.slane %v177, 5
      %v1061 = vsel %vm1047, %v1059, %v1060
      %v1062 = vrot.slane %v178, 5
      %v1063 = vrot.slane %v1062, 4
      %v1064 = vrot.slane %v179, 5
      %v1065 = vsel %vm1047, %v1063, %v1064
      %v1066 = vrot.slane %v1064, 4
      %v1067 = vrot.slane %v180, 5
      %v1068 = vsel %vm1047, %v1066, %v1067
      %v1069 = vrot.slane %v181, 5
      %v1070 = vrot.slane %v1069, 4
      %v1071 = vrot.slane %v182, 5
      %v1072 = vsel %vm1047, %v1070, %v1071
      %v1073 = vrot.slane %v1071, 4
      %v1074 = vrot.slane %v183, 5
      %v1075 = vsel %vm1047, %v1073, %v1074
      %v1076 = vrot.slane %v184, 5
      %v1077 = vrot.slane %v1076, 4
      %v1078 = vrot.slane %v185, 5
      %v1079 = vsel %vm1047, %v1077, %v1078
      %v1080 = vrot.slane %v1078, 4
      %v1081 = vrot.slane %v186, 5
      %v1082 = vsel %vm1047, %v1080, %v1081
      %v1083 = vrot.slane %v187, 5
      %v1084 = vrot.slane %v1083, 4
      %v1085 = vrot.slane %v188, 5
      %v1086 = vsel %vm1047, %v1084, %v1085
      %v1087 = vrot.slane %v1085, 4
      %v1088 = vrot.slane %v189, 5
      %v1089 = vsel %vm1047, %v1087, %v1088
      %v1090 = vrot.slane %v190, 5
      %v1091 = vrot.slane %v1090, 4
      %v1092 = vrot.slane %v191, 5
      %v1093 = vsel %vm1047, %v1091, %v1092
      %v1094 = vrot.slane %v1092, 4
      %v1095 = vrot.slane %v192, 5
      %v1096 = vsel %vm1047, %v1094, %v1095
      %v1097 = vrot.slane %v193, 5
      %v1098 = vrot.slane %v1097, 4
      %v1099 = vrot.slane %v194, 5
      %v1100 = vsel %vm1047, %v1098, %v1099
      %v1101 = vrot.slane %v1099, 4
      %v1102 = vrot.slane %v195, 5
      %v1103 = vsel %vm1047, %v1101, %v1102
      %v1104 = vrot.slane %v196, 5
      %v1105 = vrot.slane %v1104, 4
      %v1106 = vrot.slane %v197, 5
      %v1107 = vsel %vm1047, %v1105, %v1106
      %v1108 = vrot.slane %v1106, 4
      %v1109 = vrot.slane %v198, 5
      %v1110 = vsel %vm1047, %v1108, %v1109
      %v1111 = vrot.slane %v199, 5
      %v1112 = vrot.slane %v1111, 4
      %v1113 = vrot.slane %v200, 5
      %v1114 = vsel %vm1047, %v1112, %v1113
      %v1115 = vrot.slane %v1113, 4
      %v1116 = vrot.slane %v201, 5
      %v1117 = vsel %vm1047, %v1115, %v1116
      %v1118 = vrot.slane %v202, 5
      %v1119 = vrot.slane %v1118, 4
      %v1120 = vrot.slane %v203, 5
      %v1121 = vsel %vm1047, %v1119, %v1120
      %v1122 = vrot.slane %v1120, 4
      %v1123 = vrot.slane %v204, 5
      %v1124 = vsel %vm1047, %v1122, %v1123
      %v1125 = vrot.slane %v205, 5
      %v1126 = vrot.slane %v1125, 4
      %v1127 = vrot.slane %v206, 5
      %v1128 = vsel %vm1047, %v1126, %v1127
      %v1129 = vrot.slane %v1127, 4
      %v1130 = vrot.slane %v207, 5
      %v1131 = vsel %vm1047, %v1129, %v1130
      %v1132 = vrot.slane %v208, 5
      %v1133 = vrot.slane %v1132, 4
      %v1134 = vrot.slane %v209, 5
      %v1135 = vsel %vm1047, %v1133, %v1134
      %v1136 = vrot.slane %v1134, 4
      %v1137 = vrot.slane %v210, 5
      %v1138 = vsel %vm1047, %v1136, %v1137
      %v1139 = vrot.slane %v211, 5
      %v1140 = vrot.slane %v1139, 4
      %v1141 = vrot.slane %v212, 5
      %v1142 = vsel %vm1047, %v1140, %v1141
      %v1143 = vrot.slane %v1141, 4
      %v1144 = vrot.slane %v213, 5
      %v1145 = vsel %vm1047, %v1143, %v1144
      %v1146 = vrot.slane %v214, 5
      %v1147 = vrot.slane %v1146, 4
      %v1148 = vrot.slane %v215, 5
      %v1149 = vsel %vm1047, %v1147, %v1148
      %v1150 = vrot.slane %v1148, 4
      %v1151 = vrot.slane %v216, 5
      %v1152 = vsel %vm1047, %v1150, %v1151
      %v1153 = vrot.slane %v217, 5
      %v1154 = vrot.slane %v1153, 4
      %v1155 = vrot.slane %v218, 5
      %v1156 = vsel %vm1047, %v1154, %v1155
      %v1157 = vrot.slane %v1155, 4
      %v1158 = vrot.slane %v219, 5
      %v1159 = vsel %vm1047, %v1157, %v1158
      %s1160 = scalar_lea.vmem %s1, 4
      %v1161 = vld [vmem:[%s1160] sm:$0x3]
      %v1162 = vunpack.c.l.b16 %v1051
      %v1163 = vunpack.c.l.b16 %v1054
      %v1164 = vunpack.c.l.b16 %v1058
      %v1165 = vunpack.c.l.b16 %v1061
      %v1166 = vunpack.c.l.b16 %v1065
      %v1167 = vunpack.c.l.b16 %v1068
      %v1168 = vunpack.c.l.b16 %v1072
      %v1169 = vunpack.c.l.b16 %v1075
      %v1170 = vunpack.c.l.b16 %v1079
      %v1171 = vunpack.c.l.b16 %v1082
      %v1172 = vunpack.c.l.b16 %v1086
      %v1173 = vunpack.c.l.b16 %v1089
      %v1174 = vunpack.c.l.b16 %v1093
      %v1175 = vunpack.c.l.b16 %v1096
      %v1176 = vunpack.c.l.b16 %v1100
      %v1177 = vunpack.c.l.b16 %v1103
      %v1178 = vunpack.c.l.b16 %v1107
      %v1179 = vunpack.c.l.b16 %v1110
      %v1180 = vunpack.c.l.b16 %v1114
      %v1181 = vunpack.c.l.b16 %v1117
      %v1182 = vunpack.c.l.b16 %v1121
      %v1183 = vunpack.c.l.b16 %v1124
      %v1184 = vunpack.c.l.b16 %v1128
      %v1185 = vunpack.c.l.b16 %v1131
      %v1186 = vunpack.c.l.b16 %v1135
      %v1187 = vunpack.c.l.b16 %v1138
      %v1188 = vunpack.c.l.b16 %v1142
      %v1189 = vunpack.c.l.b16 %v1145
      %v1190 = vunpack.c.l.b16 %v1149
      %v1191 = vunpack.c.l.b16 %v1152
      %v1192 = vunpack.c.l.b16 %v1156
      %v1193 = vunpack.c.l.b16 %v1159
      %v1194 = vpack.c.b16 %v1163, %v1162
      %v1195 = vpack.c.b16 %v1165, %v1164
      %v1196 = vpack.c.b16 %v1167, %v1166
      %v1197 = vpack.c.b16 %v1169, %v1168
      %v1198 = vpack.c.b16 %v1171, %v1170
      %v1199 = vpack.c.b16 %v1173, %v1172
      %v1200 = vpack.c.b16 %v1175, %v1174
      %v1201 = vpack.c.b16 %v1177, %v1176
      %v1202 = vpack.c.b16 %v1179, %v1178
      %v1203 = vpack.c.b16 %v1181, %v1180
      %v1204 = vpack.c.b16 %v1183, %v1182
      %v1205 = vpack.c.b16 %v1185, %v1184
      %v1206 = vpack.c.b16 %v1187, %v1186
      %v1207 = vpack.c.b16 %v1189, %v1188
      %v1208 = vpack.c.b16 %v1191, %v1190
      %v1209 = vpack.c.b16 %v1193, %v1192
      %v1211 = vsel %vm664, %v1194, 0
      %v1214 = vsel %vm664, %v1195, 0
      %v1217 = vsel %vm664, %v1196, 0
      %v1220 = vsel %vm664, %v1197, 0
      %v1223 = vsel %vm664, %v1198, 0
      %v1226 = vsel %vm664, %v1199, 0
      %v1229 = vsel %vm664, %v1200, 0
      %v1232 = vsel %vm664, %v1201, 0
      %v1235 = vsel %vm664, %v1202, 0
      %v1238 = vsel %vm664, %v1203, 0
      %v1241 = vsel %vm664, %v1204, 0
      %v1244 = vsel %vm664, %v1205, 0
      %v1247 = vsel %vm664, %v1206, 0
      %v1250 = vsel %vm664, %v1207, 0
      %v1253 = vsel %vm664, %v1208, 0
      %v1256 = vsel %vm664, %v1209, 0
      %v1259 = vand.u32 %v1161, %v716
      %1261 = vmatpush.bf16.msra.mxu0 0
      %1262 = vmatpush.bf16.msra.mxu0 0
      %1263 = vmatpush.bf16.msra.mxu0 0
      %1264 = vmatpush.bf16.msra.mxu0 0
      %1265 = vmatpush.bf16.msra.mxu0 0
      %1266 = vmatpush.bf16.msra.mxu0 0
      %1267 = vmatpush.bf16.msra.mxu0 0
      %1268 = vmatpush.bf16.msra.mxu0 %v1259
      %1269 = vmatmul.bf16.gmra.mxu0 %v1211
      %v1270 = vpop.f32.mrf.mxu0
      %v1271 = vadd.f32 0.0, %v1270
      %v1272 = vpop.f32.mrf.mxu0
      %v1273 = vadd.f32 0.0, %v1272
      %1274 = vmatmul.bf16.gmra.mxu0 %v1214
      %v1275 = vpop.f32.mrf.mxu0
      %v1276 = vadd.f32 0.0, %v1275
      %v1277 = vpop.f32.mrf.mxu0
      %v1278 = vadd.f32 0.0, %v1277
      %1279 = vmatmul.bf16.gmra.mxu0 %v1217
      %v1280 = vpop.f32.mrf.mxu0
      %v1281 = vadd.f32 0.0, %v1280
      %v1282 = vpop.f32.mrf.mxu0
      %v1283 = vadd.f32 0.0, %v1282
      %1284 = vmatmul.bf16.gmra.mxu0 %v1220
      %v1285 = vpop.f32.mrf.mxu0
      %v1286 = vadd.f32 0.0, %v1285
      %v1287 = vpop.f32.mrf.mxu0
      %v1288 = vadd.f32 0.0, %v1287
      %1289 = vmatmul.bf16.gmra.mxu0 %v1223
      %v1290 = vpop.f32.mrf.mxu0
      %v1291 = vadd.f32 0.0, %v1290
      %v1292 = vpop.f32.mrf.mxu0
      %v1293 = vadd.f32 0.0, %v1292
      %1294 = vmatmul.bf16.gmra.mxu0 %v1226
      %v1295 = vpop.f32.mrf.mxu0
      %v1296 = vadd.f32 0.0, %v1295
      %v1297 = vpop.f32.mrf.mxu0
      %v1298 = vadd.f32 0.0, %v1297
      %1299 = vmatmul.bf16.gmra.mxu0 %v1229
      %v1300 = vpop.f32.mrf.mxu0
      %v1301 = vadd.f32 0.0, %v1300
      %v1302 = vpop.f32.mrf.mxu0
      %v1303 = vadd.f32 0.0, %v1302
      %1304 = vmatmul.bf16.gmra.mxu0 %v1232
      %v1305 = vpop.f32.mrf.mxu0
      %v1306 = vadd.f32 0.0, %v1305
      %v1307 = vpop.f32.mrf.mxu0
      %v1308 = vadd.f32 0.0, %v1307
      %1309 = vmatmul.bf16.gmra.mxu0 %v1235
      %v1310 = vpop.f32.mrf.mxu0
      %v1311 = vadd.f32 0.0, %v1310
      %v1312 = vpop.f32.mrf.mxu0
      %v1313 = vadd.f32 0.0, %v1312
      %1314 = vmatmul.bf16.gmra.mxu0 %v1238
      %v1315 = vpop.f32.mrf.mxu0
      %v1316 = vadd.f32 0.0, %v1315
      %v1317 = vpop.f32.mrf.mxu0
      %v1318 = vadd.f32 0.0, %v1317
      %1319 = vmatmul.bf16.gmra.mxu0 %v1241
      %v1320 = vpop.f32.mrf.mxu0
      %v1321 = vadd.f32 0.0, %v1320
      %v1322 = vpop.f32.mrf.mxu0
      %v1323 = vadd.f32 0.0, %v1322
      %1324 = vmatmul.bf16.gmra.mxu0 %v1244
      %v1325 = vpop.f32.mrf.mxu0
      %v1326 = vadd.f32 0.0, %v1325
      %v1327 = vpop.f32.mrf.mxu0
      %v1328 = vadd.f32 0.0, %v1327
      %1329 = vmatmul.bf16.gmra.mxu0 %v1247
      %v1330 = vpop.f32.mrf.mxu0
      %v1331 = vadd.f32 0.0, %v1330
      %v1332 = vpop.f32.mrf.mxu0
      %v1333 = vadd.f32 0.0, %v1332
      %1334 = vmatmul.bf16.gmra.mxu0 %v1250
      %v1335 = vpop.f32.mrf.mxu0
      %v1336 = vadd.f32 0.0, %v1335
      %v1337 = vpop.f32.mrf.mxu0
      %v1338 = vadd.f32 0.0, %v1337
      %1339 = vmatmul.bf16.gmra.mxu0 %v1253
      %v1340 = vpop.f32.mrf.mxu0
      %v1341 = vadd.f32 0.0, %v1340
      %v1342 = vpop.f32.mrf.mxu0
      %v1343 = vadd.f32 0.0, %v1342
      %1344 = vmatmul.bf16.gmra.mxu0 %v1256
      %v1345 = vpop.f32.mrf.mxu0
      %v1346 = vadd.f32 0.0, %v1345
      %v1347 = vpop.f32.mrf.mxu0
      %v1348 = vadd.f32 0.0, %v1347
      %1349 = vdwg.mxu0
      %v1350 = vadd.f32 %v950, %v1271
      %v1351 = vadd.f32 %v952, %v1273
      %v1352 = vadd.f32 %v955, %v1276
      %v1353 = vadd.f32 %v957, %v1278
      %v1354 = vadd.f32 %v960, %v1281
      %v1355 = vadd.f32 %v962, %v1283
      %v1356 = vadd.f32 %v965, %v1286
      %v1357 = vadd.f32 %v967, %v1288
      %v1358 = vadd.f32 %v970, %v1291
      %v1359 = vadd.f32 %v972, %v1293
      %v1360 = vadd.f32 %v975, %v1296
      %v1361 = vadd.f32 %v977, %v1298
      %v1362 = vadd.f32 %v980, %v1301
      %v1363 = vadd.f32 %v982, %v1303
      %v1364 = vadd.f32 %v985, %v1306
      %v1365 = vadd.f32 %v987, %v1308
      %v1366 = vadd.f32 %v990, %v1311
      %v1367 = vadd.f32 %v992, %v1313
      %v1368 = vadd.f32 %v995, %v1316
      %v1369 = vadd.f32 %v997, %v1318
      %v1370 = vadd.f32 %v1000, %v1321
      %v1371 = vadd.f32 %v1002, %v1323
      %v1372 = vadd.f32 %v1005, %v1326
      %v1373 = vadd.f32 %v1007, %v1328
      %v1374 = vadd.f32 %v1010, %v1331
      %v1375 = vadd.f32 %v1012, %v1333
      %v1376 = vadd.f32 %v1015, %v1336
      %v1377 = vadd.f32 %v1017, %v1338
      %v1378 = vadd.f32 %v1020, %v1341
      %v1379 = vadd.f32 %v1022, %v1343
      %v1380 = vadd.f32 %v1025, %v1346
      %v1381 = vadd.f32 %v1027, %v1348
      %s1382 = scalar_lea.vmem %s1, 6
      %v1383 = vld [vmem:[%s1382] sm:$0x3]
      %v1386 = vunpack.c.l.b16 %v220
      %v1387 = vunpack.c.l.b16 %v221
      %v1388 = vpack.c.b16 %v1387, %v1386
      %v1390 = vsel %vm664, %v1388, 0
      %v1393 = vand.u32 %v1383, %v716
      %1395 = vmatpush.bf16.msra.mxu0 0
      %1396 = vmatpush.bf16.msra.mxu0 0
      %1397 = vmatpush.bf16.msra.mxu0 0
      %1398 = vmatpush.bf16.msra.mxu0 0
      %1399 = vmatpush.bf16.msra.mxu0 0
      %1400 = vmatpush.bf16.msra.mxu0 0
      %1401 = vmatpush.bf16.msra.mxu0 0
      %1402 = vmatpush.bf16.msra.mxu0 %v1393
      %1403 = vmatmul.bf16.gmra.mxu0 %v893
      %v1404 = vpop.f32.mrf.mxu0
      %v1405 = vadd.f32 0.0, %v1404
      %v1406 = vpop.f32.mrf.mxu0
      %v1407 = vadd.f32 0.0, %v1406
      %1408 = vmatmul.bf16.gmra.mxu0 %v896
      %v1409 = vpop.f32.mrf.mxu0
      %v1410 = vadd.f32 0.0, %v1409
      %v1411 = vpop.f32.mrf.mxu0
      %v1412 = vadd.f32 0.0, %v1411
      %1413 = vmatmul.bf16.gmra.mxu0 %v899
      %v1414 = vpop.f32.mrf.mxu0
      %v1415 = vadd.f32 0.0, %v1414
      %v1416 = vpop.f32.mrf.mxu0
      %v1417 = vadd.f32 0.0, %v1416
      %1418 = vmatmul.bf16.gmra.mxu0 %v902
      %v1419 = vpop.f32.mrf.mxu0
      %v1420 = vadd.f32 0.0, %v1419
      %v1421 = vpop.f32.mrf.mxu0
      %v1422 = vadd.f32 0.0, %v1421
      %1423 = vmatmul.bf16.gmra.mxu0 %v905
      %v1424 = vpop.f32.mrf.mxu0
      %v1425 = vadd.f32 0.0, %v1424
      %v1426 = vpop.f32.mrf.mxu0
      %v1427 = vadd.f32 0.0, %v1426
      %1428 = vmatmul.bf16.gmra.mxu0 %v908
      %v1429 = vpop.f32.mrf.mxu0
      %v1430 = vadd.f32 0.0, %v1429
      %v1431 = vpop.f32.mrf.mxu0
      %v1432 = vadd.f32 0.0, %v1431
      %1433 = vmatmul.bf16.gmra.mxu0 %v911
      %v1434 = vpop.f32.mrf.mxu0
      %v1435 = vadd.f32 0.0, %v1434
      %v1436 = vpop.f32.mrf.mxu0
      %v1437 = vadd.f32 0.0, %v1436
      %1438 = vmatmul.bf16.gmra.mxu0 %v914
      %v1439 = vpop.f32.mrf.mxu0
      %v1440 = vadd.f32 0.0, %v1439
      %v1441 = vpop.f32.mrf.mxu0
      %v1442 = vadd.f32 0.0, %v1441
      %1443 = vmatmul.bf16.gmra.mxu0 %v917
      %v1444 = vpop.f32.mrf.mxu0
      %v1445 = vadd.f32 0.0, %v1444
      %v1446 = vpop.f32.mrf.mxu0
      %v1447 = vadd.f32 0.0, %v1446
      %1448 = vmatmul.bf16.gmra.mxu0 %v920
      %v1449 = vpop.f32.mrf.mxu0
      %v1450 = vadd.f32 0.0, %v1449
      %v1451 = vpop.f32.mrf.mxu0
      %v1452 = vadd.f32 0.0, %v1451
      %1453 = vmatmul.bf16.gmra.mxu0 %v923
      %v1454 = vpop.f32.mrf.mxu0
      %v1455 = vadd.f32 0.0, %v1454
      %v1456 = vpop.f32.mrf.mxu0
      %v1457 = vadd.f32 0.0, %v1456
      %1458 = vmatmul.bf16.gmra.mxu0 %v926
      %v1459 = vpop.f32.mrf.mxu0
      %v1460 = vadd.f32 0.0, %v1459
      %v1461 = vpop.f32.mrf.mxu0
      %v1462 = vadd.f32 0.0, %v1461
      %1463 = vmatmul.bf16.gmra.mxu0 %v929
      %v1464 = vpop.f32.mrf.mxu0
      %v1465 = vadd.f32 0.0, %v1464
      %v1466 = vpop.f32.mrf.mxu0
      %v1467 = vadd.f32 0.0, %v1466
      %1468 = vmatmul.bf16.gmra.mxu0 %v932
      %v1469 = vpop.f32.mrf.mxu0
      %v1470 = vadd.f32 0.0, %v1469
      %v1471 = vpop.f32.mrf.mxu0
      %v1472 = vadd.f32 0.0, %v1471
      %1473 = vmatmul.bf16.gmra.mxu0 %v935
      %v1474 = vpop.f32.mrf.mxu0
      %v1475 = vadd.f32 0.0, %v1474
      %v1476 = vpop.f32.mrf.mxu0
      %v1477 = vadd.f32 0.0, %v1476
      %1478 = vmatmul.bf16.gmra.mxu0 %v1390
      %v1479 = vpop.f32.mrf.mxu0
      %v1480 = vadd.f32 0.0, %v1479
      %v1481 = vpop.f32.mrf.mxu0
      %v1482 = vadd.f32 0.0, %v1481
      %1483 = vdwg.mxu0
      %v1484 = vadd.f32 %v1350, %v1405
      %v1485 = vadd.f32 %v1351, %v1407
      %v1486 = vadd.f32 %v1352, %v1410
      %v1487 = vadd.f32 %v1353, %v1412
      %v1488 = vadd.f32 %v1354, %v1415
      %v1489 = vadd.f32 %v1355, %v1417
      %v1490 = vadd.f32 %v1356, %v1420
      %v1491 = vadd.f32 %v1357, %v1422
      %v1492 = vadd.f32 %v1358, %v1425
      %v1493 = vadd.f32 %v1359, %v1427
      %v1494 = vadd.f32 %v1360, %v1430
      %v1495 = vadd.f32 %v1361, %v1432
      %v1496 = vadd.f32 %v1362, %v1435
      %v1497 = vadd.f32 %v1363, %v1437
      %v1498 = vadd.f32 %v1364, %v1440
      %v1499 = vadd.f32 %v1365, %v1442
      %v1500 = vadd.f32 %v1366, %v1445
      %v1501 = vadd.f32 %v1367, %v1447
      %v1502 = vadd.f32 %v1368, %v1450
      %v1503 = vadd.f32 %v1369, %v1452
      %v1504 = vadd.f32 %v1370, %v1455
      %v1505 = vadd.f32 %v1371, %v1457
      %v1506 = vadd.f32 %v1372, %v1460
      %v1507 = vadd.f32 %v1373, %v1462
      %v1508 = vadd.f32 %v1374, %v1465
      %v1509 = vadd.f32 %v1375, %v1467
      %v1510 = vadd.f32 %v1376, %v1470
      %v1511 = vadd.f32 %v1377, %v1472
      %v1512 = vadd.f32 %v1378, %v1475
      %v1513 = vadd.f32 %v1379, %v1477
      %v1514 = vadd.f32 %v1380, %v1480
      %v1515 = vadd.f32 %v1381, %v1482
      %v1517 = vshrl.u32 %v220, 16
      %v1519 = vrot.slane %v1517, 4
      %v1520 = vshll.u32 %v220, 16
      %v1522 = vrot.slane %v1520, 5
      %v1523 = vor.u32 %v1519, %v1522
      %v1524 = vrot.slane %v1523, 4
      %v1526 = vshll.u32 %v221, 16
      %v1528 = vrot.slane %v1526, 5
      %v1529 = vsel %vm229, %v1524, %v1528
      %v1530 = vshrl.u32 %v221, 16
      %v1532 = vrot.slane %v1530, 4
      %v1533 = vor.u32 %v1532, %v1528
      %v1534 = vrot.slane %v1533, 4
      %v1536 = vshll.u32 %v222, 16
      %v1538 = vrot.slane %v1536, 5
      %v1539 = vsel %vm229, %v1534, %v1538
      %s1540 = scalar_lea.vmem %s1, 8
      %v1541 = vld [vmem:[%s1540] sm:$0x3]
      %v1542 = vunpack.c.l.b16 %v1529
      %v1543 = vunpack.c.l.b16 %v1539
      %v1544 = vpack.c.b16 %v1543, %v1542
      %v1546 = vsel %vm664, %v1544, 0
      %v1549 = vand.u32 %v1541, %v716
      %1551 = vmatpush.bf16.msra.mxu0 0
      %1552 = vmatpush.bf16.msra.mxu0 0
      %1553 = vmatpush.bf16.msra.mxu0 0
      %1554 = vmatpush.bf16.msra.mxu0 0
      %1555 = vmatpush.bf16.msra.mxu0 0
      %1556 = vmatpush.bf16.msra.mxu0 0
      %1557 = vmatpush.bf16.msra.mxu0 0
      %1558 = vmatpush.bf16.msra.mxu0 %v1549
      %1559 = vmatmul.bf16.gmra.mxu0 %v669
      %v1560 = vpop.f32.mrf.mxu0
      %v1561 = vadd.f32 0.0, %v1560
      %v1562 = vpop.f32.mrf.mxu0
      %v1563 = vadd.f32 0.0, %v1562
      %1564 = vmatmul.bf16.gmra.mxu0 %v672
      %v1565 = vpop.f32.mrf.mxu0
      %v1566 = vadd.f32 0.0, %v1565
      %v1567 = vpop.f32.mrf.mxu0
      %v1568 = vadd.f32 0.0, %v1567
      %1569 = vmatmul.bf16.gmra.mxu0 %v675
      %v1570 = vpop.f32.mrf.mxu0
      %v1571 = vadd.f32 0.0, %v1570
      %v1572 = vpop.f32.mrf.mxu0
      %v1573 = vadd.f32 0.0, %v1572
      %1574 = vmatmul.bf16.gmra.mxu0 %v678
      %v1575 = vpop.f32.mrf.mxu0
      %v1576 = vadd.f32 0.0, %v1575
      %v1577 = vpop.f32.mrf.mxu0
      %v1578 = vadd.f32 0.0, %v1577
      %1579 = vmatmul.bf16.gmra.mxu0 %v681
      %v1580 = vpop.f32.mrf.mxu0
      %v1581 = vadd.f32 0.0, %v1580
      %v1582 = vpop.f32.mrf.mxu0
      %v1583 = vadd.f32 0.0, %v1582
      %1584 = vmatmul.bf16.gmra.mxu0 %v684
      %v1585 = vpop.f32.mrf.mxu0
      %v1586 = vadd.f32 0.0, %v1585
      %v1587 = vpop.f32.mrf.mxu0
      %v1588 = vadd.f32 0.0, %v1587
      %1589 = vmatmul.bf16.gmra.mxu0 %v687
      %v1590 = vpop.f32.mrf.mxu0
      %v1591 = vadd.f32 0.0, %v1590
      %v1592 = vpop.f32.mrf.mxu0
      %v1593 = vadd.f32 0.0, %v1592
      %1594 = vmatmul.bf16.gmra.mxu0 %v690
      %v1595 = vpop.f32.mrf.mxu0
      %v1596 = vadd.f32 0.0, %v1595
      %v1597 = vpop.f32.mrf.mxu0
      %v1598 = vadd.f32 0.0, %v1597
      %1599 = vmatmul.bf16.gmra.mxu0 %v693
      %v1600 = vpop.f32.mrf.mxu0
      %v1601 = vadd.f32 0.0, %v1600
      %v1602 = vpop.f32.mrf.mxu0
      %v1603 = vadd.f32 0.0, %v1602
      %1604 = vmatmul.bf16.gmra.mxu0 %v696
      %v1605 = vpop.f32.mrf.mxu0
      %v1606 = vadd.f32 0.0, %v1605
      %v1607 = vpop.f32.mrf.mxu0
      %v1608 = vadd.f32 0.0, %v1607
      %1609 = vmatmul.bf16.gmra.mxu0 %v699
      %v1610 = vpop.f32.mrf.mxu0
      %v1611 = vadd.f32 0.0, %v1610
      %v1612 = vpop.f32.mrf.mxu0
      %v1613 = vadd.f32 0.0, %v1612
      %1614 = vmatmul.bf16.gmra.mxu0 %v702
      %v1615 = vpop.f32.mrf.mxu0
      %v1616 = vadd.f32 0.0, %v1615
      %v1617 = vpop.f32.mrf.mxu0
      %v1618 = vadd.f32 0.0, %v1617
      %1619 = vmatmul.bf16.gmra.mxu0 %v705
      %v1620 = vpop.f32.mrf.mxu0
      %v1621 = vadd.f32 0.0, %v1620
      %v1622 = vpop.f32.mrf.mxu0
      %v1623 = vadd.f32 0.0, %v1622
      %1624 = vmatmul.bf16.gmra.mxu0 %v708
      %v1625 = vpop.f32.mrf.mxu0
      %v1626 = vadd.f32 0.0, %v1625
      %v1627 = vpop.f32.mrf.mxu0
      %v1628 = vadd.f32 0.0, %v1627
      %1629 = vmatmul.bf16.gmra.mxu0 %v711
      %v1630 = vpop.f32.mrf.mxu0
      %v1631 = vadd.f32 0.0, %v1630
      %v1632 = vpop.f32.mrf.mxu0
      %v1633 = vadd.f32 0.0, %v1632
      %1634 = vmatmul.bf16.gmra.mxu0 %v1546
      %v1635 = vpop.f32.mrf.mxu0
      %v1636 = vadd.f32 0.0, %v1635
      %v1637 = vpop.f32.mrf.mxu0
      %v1638 = vadd.f32 0.0, %v1637
      %1639 = vdwg.mxu0
      %v1640 = vadd.f32 %v1484, %v1561
      %v1641 = vadd.f32 %v1485, %v1563
      %v1642 = vadd.f32 %v1486, %v1566
      %v1643 = vadd.f32 %v1487, %v1568
      %v1644 = vadd.f32 %v1488, %v1571
      %v1645 = vadd.f32 %v1489, %v1573
      %v1646 = vadd.f32 %v1490, %v1576
      %v1647 = vadd.f32 %v1491, %v1578
      %v1648 = vadd.f32 %v1492, %v1581
      %v1649 = vadd.f32 %v1493, %v1583
      %v1650 = vadd.f32 %v1494, %v1586
      %v1651 = vadd.f32 %v1495, %v1588
      %v1652 = vadd.f32 %v1496, %v1591
      %v1653 = vadd.f32 %v1497, %v1593
      %v1654 = vadd.f32 %v1498, %v1596
      %v1655 = vadd.f32 %v1499, %v1598
      %v1656 = vadd.f32 %v1500, %v1601
      %v1657 = vadd.f32 %v1501, %v1603
      %v1658 = vadd.f32 %v1502, %v1606
      %v1659 = vadd.f32 %v1503, %v1608
      %v1660 = vadd.f32 %v1504, %v1611
      %v1661 = vadd.f32 %v1505, %v1613
      %v1662 = vadd.f32 %v1506, %v1616
      %v1663 = vadd.f32 %v1507, %v1618
      %v1664 = vadd.f32 %v1508, %v1621
      %v1665 = vadd.f32 %v1509, %v1623
      %v1666 = vadd.f32 %v1510, %v1626
      %v1667 = vadd.f32 %v1511, %v1628
      %v1668 = vadd.f32 %v1512, %v1631
      %v1669 = vadd.f32 %v1513, %v1633
      %v1670 = vadd.f32 %v1514, %v1636
      %v1671 = vadd.f32 %v1515, %v1638
      %v1673 = vrot.slane %v220, 5
      %v1674 = vrot.slane %v1673, 4
      %v1675 = vrot.slane %v221, 5
      %v1676 = vsel %vm1047, %v1674, %v1675
      %v1677 = vrot.slane %v1675, 4
      %v1678 = vrot.slane %v222, 5
      %v1679 = vsel %vm1047, %v1677, %v1678
      %s1680 = scalar_lea.vmem %s1, 10
      %v1681 = vld [vmem:[%s1680] sm:$0x3]
      %v1682 = vunpack.c.l.b16 %v1676
      %v1683 = vunpack.c.l.b16 %v1679
      %v1684 = vpack.c.b16 %v1683, %v1682
      %v1686 = vsel %vm664, %v1684, 0
      %v1689 = vand.u32 %v1681, %v716
      %1691 = vmatpush.bf16.msra.mxu0 0
      %1692 = vmatpush.bf16.msra.mxu0 0
      %1693 = vmatpush.bf16.msra.mxu0 0
      %1694 = vmatpush.bf16.msra.mxu0 0
      %1695 = vmatpush.bf16.msra.mxu0 0
      %1696 = vmatpush.bf16.msra.mxu0 0
      %1697 = vmatpush.bf16.msra.mxu0 0
      %1698 = vmatpush.bf16.msra.mxu0 %v1689
      %1699 = vmatmul.bf16.gmra.mxu0 %v1214
      %v1700 = vpop.f32.mrf.mxu0
      %v1701 = vadd.f32 0.0, %v1700
      %v1702 = vpop.f32.mrf.mxu0
      %v1703 = vadd.f32 0.0, %v1702
      %1704 = vmatmul.bf16.gmra.mxu0 %v1217
      %v1705 = vpop.f32.mrf.mxu0
      %v1706 = vadd.f32 0.0, %v1705
      %v1707 = vpop.f32.mrf.mxu0
      %v1708 = vadd.f32 0.0, %v1707
      %1709 = vmatmul.bf16.gmra.mxu0 %v1220
      %v1710 = vpop.f32.mrf.mxu0
      %v1711 = vadd.f32 0.0, %v1710
      %v1712 = vpop.f32.mrf.mxu0
      %v1713 = vadd.f32 0.0, %v1712
      %1714 = vmatmul.bf16.gmra.mxu0 %v1223
      %v1715 = vpop.f32.mrf.mxu0
      %v1716 = vadd.f32 0.0, %v1715
      %v1717 = vpop.f32.mrf.mxu0
      %v1718 = vadd.f32 0.0, %v1717
      %1719 = vmatmul.bf16.gmra.mxu0 %v1226
      %v1720 = vpop.f32.mrf.mxu0
      %v1721 = vadd.f32 0.0, %v1720
      %v1722 = vpop.f32.mrf.mxu0
      %v1723 = vadd.f32 0.0, %v1722
      %1724 = vmatmul.bf16.gmra.mxu0 %v1229
      %v1725 = vpop.f32.mrf.mxu0
      %v1726 = vadd.f32 0.0, %v1725
      %v1727 = vpop.f32.mrf.mxu0
      %v1728 = vadd.f32 0.0, %v1727
      %1729 = vmatmul.bf16.gmra.mxu0 %v1232
      %v1730 = vpop.f32.mrf.mxu0
      %v1731 = vadd.f32 0.0, %v1730
      %v1732 = vpop.f32.mrf.mxu0
      %v1733 = vadd.f32 0.0, %v1732
      %1734 = vmatmul.bf16.gmra.mxu0 %v1235
      %v1735 = vpop.f32.mrf.mxu0
      %v1736 = vadd.f32 0.0, %v1735
      %v1737 = vpop.f32.mrf.mxu0
      %v1738 = vadd.f32 0.0, %v1737
      %1739 = vmatmul.bf16.gmra.mxu0 %v1238
      %v1740 = vpop.f32.mrf.mxu0
      %v1741 = vadd.f32 0.0, %v1740
      %v1742 = vpop.f32.mrf.mxu0
      %v1743 = vadd.f32 0.0, %v1742
      %1744 = vmatmul.bf16.gmra.mxu0 %v1241
      %v1745 = vpop.f32.mrf.mxu0
      %v1746 = vadd.f32 0.0, %v1745
      %v1747 = vpop.f32.mrf.mxu0
      %v1748 = vadd.f32 0.0, %v1747
      %1749 = vmatmul.bf16.gmra.mxu0 %v1244
      %v1750 = vpop.f32.mrf.mxu0
      %v1751 = vadd.f32 0.0, %v1750
      %v1752 = vpop.f32.mrf.mxu0
      %v1753 = vadd.f32 0.0, %v1752
      %1754 = vmatmul.bf16.gmra.mxu0 %v1247
      %v1755 = vpop.f32.mrf.mxu0
      %v1756 = vadd.f32 0.0, %v1755
      %v1757 = vpop.f32.mrf.mxu0
      %v1758 = vadd.f32 0.0, %v1757
      %1759 = vmatmul.bf16.gmra.mxu0 %v1250
      %v1760 = vpop.f32.mrf.mxu0
      %v1761 = vadd.f32 0.0, %v1760
      %v1762 = vpop.f32.mrf.mxu0
      %v1763 = vadd.f32 0.0, %v1762
      %1764 = vmatmul.bf16.gmra.mxu0 %v1253
      %v1765 = vpop.f32.mrf.mxu0
      %v1766 = vadd.f32 0.0, %v1765
      %v1767 = vpop.f32.mrf.mxu0
      %v1768 = vadd.f32 0.0, %v1767
      %1769 = vmatmul.bf16.gmra.mxu0 %v1256
      %v1770 = vpop.f32.mrf.mxu0
      %v1771 = vadd.f32 0.0, %v1770
      %v1772 = vpop.f32.mrf.mxu0
      %v1773 = vadd.f32 0.0, %v1772
      %1774 = vmatmul.bf16.gmra.mxu0 %v1686
      %v1775 = vpop.f32.mrf.mxu0
      %v1776 = vadd.f32 0.0, %v1775
      %v1777 = vpop.f32.mrf.mxu0
      %v1778 = vadd.f32 0.0, %v1777
      %1779 = vdwg.mxu0
      %v1780 = vadd.f32 %v1640, %v1701
      %v1781 = vadd.f32 %v1641, %v1703
      %v1782 = vadd.f32 %v1642, %v1706
      %v1783 = vadd.f32 %v1643, %v1708
      %v1784 = vadd.f32 %v1644, %v1711
      %v1785 = vadd.f32 %v1645, %v1713
      %v1786 = vadd.f32 %v1646, %v1716
      %v1787 = vadd.f32 %v1647, %v1718
      %v1788 = vadd.f32 %v1648, %v1721
      %v1789 = vadd.f32 %v1649, %v1723
      %v1790 = vadd.f32 %v1650, %v1726
      %v1791 = vadd.f32 %v1651, %v1728
      %v1792 = vadd.f32 %v1652, %v1731
      %v1793 = vadd.f32 %v1653, %v1733
      %v1794 = vadd.f32 %v1654, %v1736
      %v1795 = vadd.f32 %v1655, %v1738
      %v1796 = vadd.f32 %v1656, %v1741
      %v1797 = vadd.f32 %v1657, %v1743
      %v1798 = vadd.f32 %v1658, %v1746
      %v1799 = vadd.f32 %v1659, %v1748
      %v1800 = vadd.f32 %v1660, %v1751
      %v1801 = vadd.f32 %v1661, %v1753
      %v1802 = vadd.f32 %v1662, %v1756
      %v1803 = vadd.f32 %v1663, %v1758
      %v1804 = vadd.f32 %v1664, %v1761
      %v1805 = vadd.f32 %v1665, %v1763
      %v1806 = vadd.f32 %v1666, %v1766
      %v1807 = vadd.f32 %v1667, %v1768
      %v1808 = vadd.f32 %v1668, %v1771
      %v1809 = vadd.f32 %v1669, %v1773
      %v1810 = vadd.f32 %v1670, %v1776
      %v1811 = vadd.f32 %v1671, %v1778
      %s1812 = scalar_lea.vmem %s1, 12
      %v1813 = vld [vmem:[%s1812] sm:$0x3]
      %v1816 = vunpack.c.l.b16 %v223
      %v1817 = vunpack.c.l.b16 %v224
      %v1818 = vpack.c.b16 %v1817, %v1816
      %v1820 = vsel %vm664, %v1818, 0
      %v1823 = vand.u32 %v1813, %v716
      %1825 = vmatpush.bf16.msra.mxu0 0
      %1826 = vmatpush.bf16.msra.mxu0 0
      %1827 = vmatpush.bf16.msra.mxu0 0
      %1828 = vmatpush.bf16.msra.mxu0 0
      %1829 = vmatpush.bf16.msra.mxu0 0
      %1830 = vmatpush.bf16.msra.mxu0 0
      %1831 = vmatpush.bf16.msra.mxu0 0
      %1832 = vmatpush.bf16.msra.mxu0 %v1823
      %1833 = vmatmul.bf16.gmra.mxu0 %v896
      %v1834 = vpop.f32.mrf.mxu0
      %v1835 = vadd.f32 0.0, %v1834
      %v1836 = vpop.f32.mrf.mxu0
      %v1837 = vadd.f32 0.0, %v1836
      %1838 = vmatmul.bf16.gmra.mxu0 %v899
      %v1839 = vpop.f32.mrf.mxu0
      %v1840 = vadd.f32 0.0, %v1839
      %v1841 = vpop.f32.mrf.mxu0
      %v1842 = vadd.f32 0.0, %v1841
      %1843 = vmatmul.bf16.gmra.mxu0 %v902
      %v1844 = vpop.f32.mrf.mxu0
      %v1845 = vadd.f32 0.0, %v1844
      %v1846 = vpop.f32.mrf.mxu0
      %v1847 = vadd.f32 0.0, %v1846
      %1848 = vmatmul.bf16.gmra.mxu0 %v905
      %v1849 = vpop.f32.mrf.mxu0
      %v1850 = vadd.f32 0.0, %v1849
      %v1851 = vpop.f32.mrf.mxu0
      %v1852 = vadd.f32 0.0, %v1851
      %1853 = vmatmul.bf16.gmra.mxu0 %v908
      %v1854 = vpop.f32.mrf.mxu0
      %v1855 = vadd.f32 0.0, %v1854
      %v1856 = vpop.f32.mrf.mxu0
      %v1857 = vadd.f32 0.0, %v1856
      %1858 = vmatmul.bf16.gmra.mxu0 %v911
      %v1859 = vpop.f32.mrf.mxu0
      %v1860 = vadd.f32 0.0, %v1859
      %v1861 = vpop.f32.mrf.mxu0
      %v1862 = vadd.f32 0.0, %v1861
      %1863 = vmatmul.bf16.gmra.mxu0 %v914
      %v1864 = vpop.f32.mrf.mxu0
      %v1865 = vadd.f32 0.0, %v1864
      %v1866 = vpop.f32.mrf.mxu0
      %v1867 = vadd.f32 0.0, %v1866
      %1868 = vmatmul.bf16.gmra.mxu0 %v917
      %v1869 = vpop.f32.mrf.mxu0
      %v1870 = vadd.f32 0.0, %v1869
      %v1871 = vpop.f32.mrf.mxu0
      %v1872 = vadd.f32 0.0, %v1871
      %1873 = vmatmul.bf16.gmra.mxu0 %v920
      %v1874 = vpop.f32.mrf.mxu0
      %v1875 = vadd.f32 0.0, %v1874
      %v1876 = vpop.f32.mrf.mxu0
      %v1877 = vadd.f32 0.0, %v1876
      %1878 = vmatmul.bf16.gmra.mxu0 %v923
      %v1879 = vpop.f32.mrf.mxu0
      %v1880 = vadd.f32 0.0, %v1879
      %v1881 = vpop.f32.mrf.mxu0
      %v1882 = vadd.f32 0.0, %v1881
      %1883 = vmatmul.bf16.gmra.mxu0 %v926
      %v1884 = vpop.f32.mrf.mxu0
      %v1885 = vadd.f32 0.0, %v1884
      %v1886 = vpop.f32.mrf.mxu0
      %v1887 = vadd.f32 0.0, %v1886
      %1888 = vmatmul.bf16.gmra.mxu0 %v929
      %v1889 = vpop.f32.mrf.mxu0
      %v1890 = vadd.f32 0.0, %v1889
      %v1891 = vpop.f32.mrf.mxu0
      %v1892 = vadd.f32 0.0, %v1891
      %1893 = vmatmul.bf16.gmra.mxu0 %v932
      %v1894 = vpop.f32.mrf.mxu0
      %v1895 = vadd.f32 0.0, %v1894
      %v1896 = vpop.f32.mrf.mxu0
      %v1897 = vadd.f32 0.0, %v1896
      %1898 = vmatmul.bf16.gmra.mxu0 %v935
      %v1899 = vpop.f32.mrf.mxu0
      %v1900 = vadd.f32 0.0, %v1899
      %v1901 = vpop.f32.mrf.mxu0
      %v1902 = vadd.f32 0.0, %v1901
      %1903 = vmatmul.bf16.gmra.mxu0 %v1390
      %v1904 = vpop.f32.mrf.mxu0
      %v1905 = vadd.f32 0.0, %v1904
      %v1906 = vpop.f32.mrf.mxu0
      %v1907 = vadd.f32 0.0, %v1906
      %1908 = vmatmul.bf16.gmra.mxu0 %v1820
      %v1909 = vpop.f32.mrf.mxu0
      %v1910 = vadd.f32 0.0, %v1909
      %v1911 = vpop.f32.mrf.mxu0
      %v1912 = vadd.f32 0.0, %v1911
      %1913 = vdwg.mxu0
      %v1914 = vadd.f32 %v1780, %v1835
      %v1915 = vadd.f32 %v1781, %v1837
      %v1916 = vadd.f32 %v1782, %v1840
      %v1917 = vadd.f32 %v1783, %v1842
      %v1918 = vadd.f32 %v1784, %v1845
      %v1919 = vadd.f32 %v1785, %v1847
      %v1920 = vadd.f32 %v1786, %v1850
      %v1921 = vadd.f32 %v1787, %v1852
      %v1922 = vadd.f32 %v1788, %v1855
      %v1923 = vadd.f32 %v1789, %v1857
      %v1924 = vadd.f32 %v1790, %v1860
      %v1925 = vadd.f32 %v1791, %v1862
      %v1926 = vadd.f32 %v1792, %v1865
      %v1927 = vadd.f32 %v1793, %v1867
      %v1928 = vadd.f32 %v1794, %v1870
      %v1929 = vadd.f32 %v1795, %v1872
      %v1930 = vadd.f32 %v1796, %v1875
      %v1931 = vadd.f32 %v1797, %v1877
      %v1932 = vadd.f32 %v1798, %v1880
      %v1933 = vadd.f32 %v1799, %v1882
      %v1934 = vadd.f32 %v1800, %v1885
      %v1935 = vadd.f32 %v1801, %v1887
      %v1936 = vadd.f32 %v1802, %v1890
      %v1937 = vadd.f32 %v1803, %v1892
      %v1938 = vadd.f32 %v1804, %v1895
      %v1939 = vadd.f32 %v1805, %v1897
      %v1940 = vadd.f32 %v1806, %v1900
      %v1941 = vadd.f32 %v1807, %v1902
      %v1942 = vadd.f32 %v1808, %v1905
      %v1943 = vadd.f32 %v1809, %v1907
      %v1944 = vadd.f32 %v1810, %v1910
      %v1945 = vadd.f32 %v1811, %v1912
      %v1947 = vshrl.u32 %v223, 16
      %v1949 = vrot.slane %v1947, 4
      %v1950 = vshll.u32 %v223, 16
      %v1952 = vrot.slane %v1950, 5
      %v1953 = vor.u32 %v1949, %v1952
      %v1954 = vrot.slane %v1953, 4
      %v1956 = vshll.u32 %v224, 16
      %v1958 = vrot.slane %v1956, 5
      %v1959 = vsel %vm229, %v1954, %v1958
      %v1960 = vshrl.u32 %v224, 16
      %v1962 = vrot.slane %v1960, 4
      %v1963 = vor.u32 %v1962, %v1958
      %v1964 = vrot.slane %v1963, 4
      %v1966 = vshll.u32 %v225, 16
      %v1968 = vrot.slane %v1966, 5
      %v1969 = vsel %vm229, %v1964, %v1968
      %s1970 = scalar_lea.vmem %s1, 14
      %v1971 = vld [vmem:[%s1970] sm:$0x3]
      %v1972 = vunpack.c.l.b16 %v1959
      %v1973 = vunpack.c.l.b16 %v1969
      %v1974 = vpack.c.b16 %v1973, %v1972
      %v1976 = vsel %vm664, %v1974, 0
      %v1979 = vand.u32 %v1971, %v716
      %1981 = vmatpush.bf16.msra.mxu0 0
      %1982 = vmatpush.bf16.msra.mxu0 0
      %1983 = vmatpush.bf16.msra.mxu0 0
      %1984 = vmatpush.bf16.msra.mxu0 0
      %1985 = vmatpush.bf16.msra.mxu0 0
      %1986 = vmatpush.bf16.msra.mxu0 0
      %1987 = vmatpush.bf16.msra.mxu0 0
      %1988 = vmatpush.bf16.msra.mxu0 %v1979
      %1989 = vmatmul.bf16.gmra.mxu0 %v672
      %v1990 = vpop.f32.mrf.mxu0
      %v1991 = vadd.f32 0.0, %v1990
      %v1992 = vpop.f32.mrf.mxu0
      %v1993 = vadd.f32 0.0, %v1992
      %1994 = vmatmul.bf16.gmra.mxu0 %v675
      %v1995 = vpop.f32.mrf.mxu0
      %v1996 = vadd.f32 0.0, %v1995
      %v1997 = vpop.f32.mrf.mxu0
      %v1998 = vadd.f32 0.0, %v1997
      %1999 = vmatmul.bf16.gmra.mxu0 %v678
      %v2000 = vpop.f32.mrf.mxu0
      %v2001 = vadd.f32 0.0, %v2000
      %v2002 = vpop.f32.mrf.mxu0
      %v2003 = vadd.f32 0.0, %v2002
      %2004 = vmatmul.bf16.gmra.mxu0 %v681
      %v2005 = vpop.f32.mrf.mxu0
      %v2006 = vadd.f32 0.0, %v2005
      %v2007 = vpop.f32.mrf.mxu0
      %v2008 = vadd.f32 0.0, %v2007
      %2009 = vmatmul.bf16.gmra.mxu0 %v684
      %v2010 = vpop.f32.mrf.mxu0
      %v2011 = vadd.f32 0.0, %v2010
      %v2012 = vpop.f32.mrf.mxu0
      %v2013 = vadd.f32 0.0, %v2012
      %2014 = vmatmul.bf16.gmra.mxu0 %v687
      %v2015 = vpop.f32.mrf.mxu0
      %v2016 = vadd.f32 0.0, %v2015
      %v2017 = vpop.f32.mrf.mxu0
      %v2018 = vadd.f32 0.0, %v2017
      %2019 = vmatmul.bf16.gmra.mxu0 %v690
      %v2020 = vpop.f32.mrf.mxu0
      %v2021 = vadd.f32 0.0, %v2020
      %v2022 = vpop.f32.mrf.mxu0
      %v2023 = vadd.f32 0.0, %v2022
      %2024 = vmatmul.bf16.gmra.mxu0 %v693
      %v2025 = vpop.f32.mrf.mxu0
      %v2026 = vadd.f32 0.0, %v2025
      %v2027 = vpop.f32.mrf.mxu0
      %v2028 = vadd.f32 0.0, %v2027
      %2029 = vmatmul.bf16.gmra.mxu0 %v696
      %v2030 = vpop.f32.mrf.mxu0
      %v2031 = vadd.f32 0.0, %v2030
      %v2032 = vpop.f32.mrf.mxu0
      %v2033 = vadd.f32 0.0, %v2032
      %2034 = vmatmul.bf16.gmra.mxu0 %v699
      %v2035 = vpop.f32.mrf.mxu0
      %v2036 = vadd.f32 0.0, %v2035
      %v2037 = vpop.f32.mrf.mxu0
      %v2038 = vadd.f32 0.0, %v2037
      %2039 = vmatmul.bf16.gmra.mxu0 %v702
      %v2040 = vpop.f32.mrf.mxu0
      %v2041 = vadd.f32 0.0, %v2040
      %v2042 = vpop.f32.mrf.mxu0
      %v2043 = vadd.f32 0.0, %v2042
      %2044 = vmatmul.bf16.gmra.mxu0 %v705
      %v2045 = vpop.f32.mrf.mxu0
      %v2046 = vadd.f32 0.0, %v2045
      %v2047 = vpop.f32.mrf.mxu0
      %v2048 = vadd.f32 0.0, %v2047
      %2049 = vmatmul.bf16.gmra.mxu0 %v708
      %v2050 = vpop.f32.mrf.mxu0
      %v2051 = vadd.f32 0.0, %v2050
      %v2052 = vpop.f32.mrf.mxu0
      %v2053 = vadd.f32 0.0, %v2052
      %2054 = vmatmul.bf16.gmra.mxu0 %v711
      %v2055 = vpop.f32.mrf.mxu0
      %v2056 = vadd.f32 0.0, %v2055
      %v2057 = vpop.f32.mrf.mxu0
      %v2058 = vadd.f32 0.0, %v2057
      %2059 = vmatmul.bf16.gmra.mxu0 %v1546
      %v2060 = vpop.f32.mrf.mxu0
      %v2061 = vadd.f32 0.0, %v2060
      %v2062 = vpop.f32.mrf.mxu0
      %v2063 = vadd.f32 0.0, %v2062
      %2064 = vmatmul.bf16.gmra.mxu0 %v1976
      %v2065 = vpop.f32.mrf.mxu0
      %v2066 = vadd.f32 0.0, %v2065
      %v2067 = vpop.f32.mrf.mxu0
      %v2068 = vadd.f32 0.0, %v2067
      %2069 = vdwg.mxu0
      %v2070 = vadd.f32 %v1914, %v1991
      %v2071 = vadd.f32 %v1915, %v1993
      %v2072 = vadd.f32 %v1916, %v1996
      %v2073 = vadd.f32 %v1917, %v1998
      %v2074 = vadd.f32 %v1918, %v2001
      %v2075 = vadd.f32 %v1919, %v2003
      %v2076 = vadd.f32 %v1920, %v2006
      %v2077 = vadd.f32 %v1921, %v2008
      %v2078 = vadd.f32 %v1922, %v2011
      %v2079 = vadd.f32 %v1923, %v2013
      %v2080 = vadd.f32 %v1924, %v2016
      %v2081 = vadd.f32 %v1925, %v2018
      %v2082 = vadd.f32 %v1926, %v2021
      %v2083 = vadd.f32 %v1927, %v2023
      %v2084 = vadd.f32 %v1928, %v2026
      %v2085 = vadd.f32 %v1929, %v2028
      %v2086 = vadd.f32 %v1930, %v2031
      %v2087 = vadd.f32 %v1931, %v2033
      %v2088 = vadd.f32 %v1932, %v2036
      %v2089 = vadd.f32 %v1933, %v2038
      %v2090 = vadd.f32 %v1934, %v2041
      %v2091 = vadd.f32 %v1935, %v2043
      %v2092 = vadd.f32 %v1936, %v2046
      %v2093 = vadd.f32 %v1937, %v2048
      %v2094 = vadd.f32 %v1938, %v2051
      %v2095 = vadd.f32 %v1939, %v2053
      %v2096 = vadd.f32 %v1940, %v2056
      %v2097 = vadd.f32 %v1941, %v2058
      %v2098 = vadd.f32 %v1942, %v2061
      %v2099 = vadd.f32 %v1943, %v2063
      %v2100 = vadd.f32 %v1944, %v2066
      %v2101 = vadd.f32 %v1945, %v2068
      %v2103 = vrot.slane %v223, 5
      %v2104 = vrot.slane %v2103, 4
      %v2105 = vrot.slane %v224, 5
      %v2106 = vsel %vm1047, %v2104, %v2105
      %v2107 = vrot.slane %v2105, 4
      %v2108 = vrot.slane %v225, 5
      %v2109 = vsel %vm1047, %v2107, %v2108
      %s2110 = scalar_lea.vmem %s1, 16
      %v2111 = vld [vmem:[%s2110] sm:$0x3]
      %v2112 = vunpack.c.l.b16 %v2106
      %v2113 = vunpack.c.l.b16 %v2109
      %v2114 = vpack.c.b16 %v2113, %v2112
      %v2116 = vsel %vm664, %v2114, 0
      %v2119 = vand.u32 %v2111, %v716
      %2121 = vmatpush.bf16.msra.mxu0 0
      %2122 = vmatpush.bf16.msra.mxu0 0
      %2123 = vmatpush.bf16.msra.mxu0 0
      %2124 = vmatpush.bf16.msra.mxu0 0
      %2125 = vmatpush.bf16.msra.mxu0 0
      %2126 = vmatpush.bf16.msra.mxu0 0
      %2127 = vmatpush.bf16.msra.mxu0 0
      %2128 = vmatpush.bf16.msra.mxu0 %v2119
      %2129 = vmatmul.bf16.gmra.mxu0 %v1217
      %v2130 = vpop.f32.mrf.mxu0
      %v2131 = vadd.f32 0.0, %v2130
      %v2132 = vpop.f32.mrf.mxu0
      %v2133 = vadd.f32 0.0, %v2132
      %2134 = vmatmul.bf16.gmra.mxu0 %v1220
      %v2135 = vpop.f32.mrf.mxu0
      %v2136 = vadd.f32 0.0, %v2135
      %v2137 = vpop.f32.mrf.mxu0
      %v2138 = vadd.f32 0.0, %v2137
      %2139 = vmatmul.bf16.gmra.mxu0 %v1223
      %v2140 = vpop.f32.mrf.mxu0
      %v2141 = vadd.f32 0.0, %v2140
      %v2142 = vpop.f32.mrf.mxu0
      %v2143 = vadd.f32 0.0, %v2142
      %2144 = vmatmul.bf16.gmra.mxu0 %v1226
      %v2145 = vpop.f32.mrf.mxu0
      %v2146 = vadd.f32 0.0, %v2145
      %v2147 = vpop.f32.mrf.mxu0
      %v2148 = vadd.f32 0.0, %v2147
      %2149 = vmatmul.bf16.gmra.mxu0 %v1229
      %v2150 = vpop.f32.mrf.mxu0
      %v2151 = vadd.f32 0.0, %v2150
      %v2152 = vpop.f32.mrf.mxu0
      %v2153 = vadd.f32 0.0, %v2152
      %2154 = vmatmul.bf16.gmra.mxu0 %v1232
      %v2155 = vpop.f32.mrf.mxu0
      %v2156 = vadd.f32 0.0, %v2155
      %v2157 = vpop.f32.mrf.mxu0
      %v2158 = vadd.f32 0.0, %v2157
      %2159 = vmatmul.bf16.gmra.mxu0 %v1235
      %v2160 = vpop.f32.mrf.mxu0
      %v2161 = vadd.f32 0.0, %v2160
      %v2162 = vpop.f32.mrf.mxu0
      %v2163 = vadd.f32 0.0, %v2162
      %2164 = vmatmul.bf16.gmra.mxu0 %v1238
      %v2165 = vpop.f32.mrf.mxu0
      %v2166 = vadd.f32 0.0, %v2165
      %v2167 = vpop.f32.mrf.mxu0
      %v2168 = vadd.f32 0.0, %v2167
      %2169 = vmatmul.bf16.gmra.mxu0 %v1241
      %v2170 = vpop.f32.mrf.mxu0
      %v2171 = vadd.f32 0.0, %v2170
      %v2172 = vpop.f32.mrf.mxu0
      %v2173 = vadd.f32 0.0, %v2172
      %2174 = vmatmul.bf16.gmra.mxu0 %v1244
      %v2175 = vpop.f32.mrf.mxu0
      %v2176 = vadd.f32 0.0, %v2175
      %v2177 = vpop.f32.mrf.mxu0
      %v2178 = vadd.f32 0.0, %v2177
      %2179 = vmatmul.bf16.gmra.mxu0 %v1247
      %v2180 = vpop.f32.mrf.mxu0
      %v2181 = vadd.f32 0.0, %v2180
      %v2182 = vpop.f32.mrf.mxu0
      %v2183 = vadd.f32 0.0, %v2182
      %2184 = vmatmul.bf16.gmra.mxu0 %v1250
      %v2185 = vpop.f32.mrf.mxu0
      %v2186 = vadd.f32 0.0, %v2185
      %v2187 = vpop.f32.mrf.mxu0
      %v2188 = vadd.f32 0.0, %v2187
      %2189 = vmatmul.bf16.gmra.mxu0 %v1253
      %v2190 = vpop.f32.mrf.mxu0
      %v2191 = vadd.f32 0.0, %v2190
      %v2192 = vpop.f32.mrf.mxu0
      %v2193 = vadd.f32 0.0, %v2192
      %2194 = vmatmul.bf16.gmra.mxu0 %v1256
      %v2195 = vpop.f32.mrf.mxu0
      %v2196 = vadd.f32 0.0, %v2195
      %v2197 = vpop.f32.mrf.mxu0
      %v2198 = vadd.f32 0.0, %v2197
      %2199 = vmatmul.bf16.gmra.mxu0 %v1686
      %v2200 = vpop.f32.mrf.mxu0
      %v2201 = vadd.f32 0.0, %v2200
      %v2202 = vpop.f32.mrf.mxu0
      %v2203 = vadd.f32 0.0, %v2202
      %2204 = vmatmul.bf16.gmra.mxu0 %v2116
      %v2205 = vpop.f32.mrf.mxu0
      %v2206 = vadd.f32 0.0, %v2205
      %v2207 = vpop.f32.mrf.mxu0
      %v2208 = vadd.f32 0.0, %v2207
      %2209 = vdwg.mxu0
      %v2210 = vadd.f32 %v2070, %v2131
      %v2211 = vadd.f32 %v2071, %v2133
      %v2212 = vadd.f32 %v2072, %v2136
      %v2213 = vadd.f32 %v2073, %v2138
      %v2214 = vadd.f32 %v2074, %v2141
      %v2215 = vadd.f32 %v2075, %v2143
      %v2216 = vadd.f32 %v2076, %v2146
      %v2217 = vadd.f32 %v2077, %v2148
      %v2218 = vadd.f32 %v2078, %v2151
      %v2219 = vadd.f32 %v2079, %v2153
      %v2220 = vadd.f32 %v2080, %v2156
      %v2221 = vadd.f32 %v2081, %v2158
      %v2222 = vadd.f32 %v2082, %v2161
      %v2223 = vadd.f32 %v2083, %v2163
      %v2224 = vadd.f32 %v2084, %v2166
      %v2225 = vadd.f32 %v2085, %v2168
      %v2226 = vadd.f32 %v2086, %v2171
      %v2227 = vadd.f32 %v2087, %v2173
      %v2228 = vadd.f32 %v2088, %v2176
      %v2229 = vadd.f32 %v2089, %v2178
      %v2230 = vadd.f32 %v2090, %v2181
      %v2231 = vadd.f32 %v2091, %v2183
      %v2232 = vadd.f32 %v2092, %v2186
      %v2233 = vadd.f32 %v2093, %v2188
      %v2234 = vadd.f32 %v2094, %v2191
      %v2235 = vadd.f32 %v2095, %v2193
      %v2236 = vadd.f32 %v2096, %v2196
      %v2237 = vadd.f32 %v2097, %v2198
      %v2238 = vadd.f32 %v2098, %v2201
      %v2239 = vadd.f32 %v2099, %v2203
      %v2240 = vadd.f32 %v2100, %v2206
      %v2241 = vadd.f32 %v2101, %v2208
      %v2242 = vld [vmem:[%s2] sm:$0x1]
      %v2244 = vperm.slane %v2242, 0
      %v2246 = vadd.f32 %v2210, %v2244
      %v2247 = vadd.f32 %v2211, %v2244
      %v2248 = vadd.f32 %v2212, %v2244
      %v2249 = vadd.f32 %v2213, %v2244
      %v2250 = vadd.f32 %v2214, %v2244
      %v2251 = vadd.f32 %v2215, %v2244
      %v2252 = vadd.f32 %v2216, %v2244
      %v2253 = vadd.f32 %v2217, %v2244
      %v2254 = vadd.f32 %v2218, %v2244
      %v2255 = vadd.f32 %v2219, %v2244
      %v2256 = vadd.f32 %v2220, %v2244
      %v2257 = vadd.f32 %v2221, %v2244
      %v2258 = vadd.f32 %v2222, %v2244
      %v2259 = vadd.f32 %v2223, %v2244
      %v2260 = vadd.f32 %v2224, %v2244
      %v2261 = vadd.f32 %v2225, %v2244
      %v2262 = vadd.f32 %v2226, %v2244
      %v2263 = vadd.f32 %v2227, %v2244
      %v2264 = vadd.f32 %v2228, %v2244
      %v2265 = vadd.f32 %v2229, %v2244
      %v2266 = vadd.f32 %v2230, %v2244
      %v2267 = vadd.f32 %v2231, %v2244
      %v2268 = vadd.f32 %v2232, %v2244
      %v2269 = vadd.f32 %v2233, %v2244
      %v2270 = vadd.f32 %v2234, %v2244
      %v2271 = vadd.f32 %v2235, %v2244
      %v2272 = vadd.f32 %v2236, %v2244
      %v2273 = vadd.f32 %v2237, %v2244
      %v2274 = vadd.f32 %v2238, %v2244
      %v2275 = vadd.f32 %v2239, %v2244
      %v2276 = vadd.f32 %v2240, %v2244
      %v2277 = vadd.f32 %v2241, %v2244
      %v2278 = vmax.f32 %v2246, 0.0
      %v2279 = vmax.f32 %v2247, 0.0
      %v2280 = vmax.f32 %v2248, 0.0
      %v2281 = vmax.f32 %v2249, 0.0
      %v2282 = vmax.f32 %v2250, 0.0
      %v2283 = vmax.f32 %v2251, 0.0
      %v2284 = vmax.f32 %v2252, 0.0
      %v2285 = vmax.f32 %v2253, 0.0
      %v2286 = vmax.f32 %v2254, 0.0
      %v2287 = vmax.f32 %v2255, 0.0
      %v2288 = vmax.f32 %v2256, 0.0
      %v2289 = vmax.f32 %v2257, 0.0
      %v2290 = vmax.f32 %v2258, 0.0
      %v2291 = vmax.f32 %v2259, 0.0
      %v2292 = vmax.f32 %v2260, 0.0
      %v2293 = vmax.f32 %v2261, 0.0
      %v2294 = vmax.f32 %v2262, 0.0
      %v2295 = vmax.f32 %v2263, 0.0
      %v2296 = vmax.f32 %v2264, 0.0
      %v2297 = vmax.f32 %v2265, 0.0
      %v2298 = vmax.f32 %v2266, 0.0
      %v2299 = vmax.f32 %v2267, 0.0
      %v2300 = vmax.f32 %v2268, 0.0
      %v2301 = vmax.f32 %v2269, 0.0
      %v2302 = vmax.f32 %v2270, 0.0
      %v2303 = vmax.f32 %v2271, 0.0
      %v2304 = vmax.f32 %v2272, 0.0
      %v2305 = vmax.f32 %v2273, 0.0
      %v2306 = vmax.f32 %v2274, 0.0
      %v2307 = vmax.f32 %v2275, 0.0
      %v2308 = vmax.f32 %v2276, 0.0
      %v2309 = vmax.f32 %v2277, 0.0
      %v2342 = vrot.slane %v2278, 2
      %v2343 = vrot.slane %v2278, 4
      %v2344 = vrot.slane %v2278, 6
      %v2345 = vrot.slane %v2279, 2
      %v2346 = vrot.slane %v2279, 4
      %v2347 = vrot.slane %v2279, 6
      %v2348 = vrot.slane %v2280, 2
      %v2349 = vrot.slane %v2280, 4
      %v2350 = vrot.slane %v2280, 6
      %v2351 = vrot.slane %v2281, 2
      %v2352 = vrot.slane %v2281, 4
      %v2353 = vrot.slane %v2281, 6
      %v2354 = vrot.slane %v2282, 2
      %v2355 = vrot.slane %v2282, 4
      %v2356 = vrot.slane %v2282, 6
      %v2357 = vrot.slane %v2283, 2
      %v2358 = vrot.slane %v2283, 4
      %v2359 = vrot.slane %v2283, 6
      %v2360 = vrot.slane %v2284, 2
      %v2361 = vrot.slane %v2284, 4
      %v2362 = vrot.slane %v2284, 6
      %v2363 = vrot.slane %v2285, 2
      %v2364 = vrot.slane %v2285, 4
      %v2365 = vrot.slane %v2285, 6
      %v2366 = vrot.slane %v2286, 2
      %v2367 = vrot.slane %v2286, 4
      %v2368 = vrot.slane %v2286, 6
      %v2369 = vrot.slane %v2287, 2
      %v2370 = vrot.slane %v2287, 4
      %v2371 = vrot.slane %v2287, 6
      %v2372 = vrot.slane %v2288, 2
      %v2373 = vrot.slane %v2288, 4
      %v2374 = vrot.slane %v2288, 6
      %v2375 = vrot.slane %v2289, 2
      %v2376 = vrot.slane %v2289, 4
      %v2377 = vrot.slane %v2289, 6
      %v2378 = vrot.slane %v2290, 2
      %v2379 = vrot.slane %v2290, 4
      %v2380 = vrot.slane %v2290, 6
      %v2381 = vrot.slane %v2291, 2
      %v2382 = vrot.slane %v2291, 4
      %v2383 = vrot.slane %v2291, 6
      %v2384 = vrot.slane %v2292, 2
      %v2385 = vrot.slane %v2292, 4
      %v2386 = vrot.slane %v2292, 6
      %v2387 = vrot.slane %v2293, 2
      %v2388 = vrot.slane %v2293, 4
      %v2389 = vrot.slane %v2293, 6
      %v2390 = vrot.slane %v2294, 2
      %v2391 = vrot.slane %v2294, 4
      %v2392 = vrot.slane %v2294, 6
      %v2393 = vrot.slane %v2295, 2
      %v2394 = vrot.slane %v2295, 4
      %v2395 = vrot.slane %v2295, 6
      %v2396 = vrot.slane %v2296, 2
      %v2397 = vrot.slane %v2296, 4
      %v2398 = vrot.slane %v2296, 6
      %v2399 = vrot.slane %v2297, 2
      %v2400 = vrot.slane %v2297, 4
      %v2401 = vrot.slane %v2297, 6
      %v2402 = vrot.slane %v2298, 2
      %v2403 = vrot.slane %v2298, 4
      %v2404 = vrot.slane %v2298, 6
      %v2405 = vrot.slane %v2299, 2
      %v2406 = vrot.slane %v2299, 4
      %v2407 = vrot.slane %v2299, 6
      %v2408 = vrot.slane %v2300, 2
      %v2409 = vrot.slane %v2300, 4
      %v2410 = vrot.slane %v2300, 6
      %v2411 = vrot.slane %v2301, 2
      %v2412 = vrot.slane %v2301, 4
      %v2413 = vrot.slane %v2301, 6
      %v2414 = vrot.slane %v2302, 2
      %v2415 = vrot.slane %v2302, 4
      %v2416 = vrot.slane %v2302, 6
      %v2417 = vrot.slane %v2303, 2
      %v2418 = vrot.slane %v2303, 4
      %v2419 = vrot.slane %v2303, 6
      %v2420 = vrot.slane %v2304, 2
      %v2421 = vrot.slane %v2304, 4
      %v2422 = vrot.slane %v2304, 6
      %v2423 = vrot.slane %v2305, 2
      %v2424 = vrot.slane %v2305, 4
      %v2425 = vrot.slane %v2305, 6
      %v2426 = vrot.slane %v2306, 2
      %v2427 = vrot.slane %v2306, 4
      %v2428 = vrot.slane %v2306, 6
      %v2429 = vrot.slane %v2307, 2
      %v2430 = vrot.slane %v2307, 4
      %v2431 = vrot.slane %v2307, 6
      %v2432 = vrot.slane %v2308, 2
      %v2433 = vrot.slane %v2308, 4
      %v2434 = vrot.slane %v2308, 6
      %v2435 = vrot.slane %v2309, 2
      %v2436 = vrot.slane %v2309, 4
      %v2437 = vrot.slane %v2309, 6
      %vm2534 = vcmask 58368
      %v2535 = vsel %vm2534, %v2278, -inf
      %v2536 = vsel %vm2534, %v2280, -inf
      %v2537 = vmax.f32 %v2535, %v2536
      %v2538 = vrot.slane %v2537, 4
      %v2539 = vmax.f32 %v2537, %v2538
      %v2540 = vrot.slane %v2539, 2
      %v2541 = vmax.f32 %v2539, %v2540
      %v2542 = vrot.slane %v2541, 1
      %v2543 = vmax.f32 %v2541, %v2542
      %v2544 = vsel %vm2534, %v2342, -inf
      %v2545 = vsel %vm2534, %v2348, -inf
      %v2546 = vmax.f32 %v2544, %v2545
      %v2547 = vrot.slane %v2546, 4
      %v2548 = vmax.f32 %v2546, %v2547
      %v2549 = vrot.slane %v2548, 2
      %v2550 = vmax.f32 %v2548, %v2549
      %v2551 = vrot.slane %v2550, 1
      %v2552 = vmax.f32 %v2550, %v2551
      %v2553 = vsel %vm2534, %v2343, -inf
      %v2554 = vsel %vm2534, %v2349, -inf
      %v2555 = vmax.f32 %v2553, %v2554
      %v2556 = vrot.slane %v2555, 4
      %v2557 = vmax.f32 %v2555, %v2556
      %v2558 = vrot.slane %v2557, 2
      %v2559 = vmax.f32 %v2557, %v2558
      %v2560 = vrot.slane %v2559, 1
      %v2561 = vmax.f32 %v2559, %v2560
      %v2562 = vsel %vm2534, %v2344, -inf
      %v2563 = vsel %vm2534, %v2350, -inf
      %v2564 = vmax.f32 %v2562, %v2563
      %v2565 = vrot.slane %v2564, 4
      %v2566 = vmax.f32 %v2564, %v2565
      %v2567 = vrot.slane %v2566, 2
      %v2568 = vmax.f32 %v2566, %v2567
      %v2569 = vrot.slane %v2568, 1
      %v2570 = vmax.f32 %v2568, %v2569
      %v2571 = vsel %vm2534, %v2279, -inf
      %v2572 = vsel %vm2534, %v2281, -inf
      %v2573 = vmax.f32 %v2571, %v2572
      %v2574 = vrot.slane %v2573, 4
      %v2575 = vmax.f32 %v2573, %v2574
      %v2576 = vrot.slane %v2575, 2
      %v2577 = vmax.f32 %v2575, %v2576
      %v2578 = vrot.slane %v2577, 1
      %v2579 = vmax.f32 %v2577, %v2578
      %v2580 = vsel %vm2534, %v2345, -inf
      %v2581 = vsel %vm2534, %v2351, -inf
      %v2582 = vmax.f32 %v2580, %v2581
      %v2583 = vrot.slane %v2582, 4
      %v2584 = vmax.f32 %v2582, %v2583
      %v2585 = vrot.slane %v2584, 2
      %v2586 = vmax.f32 %v2584, %v2585
      %v2587 = vrot.slane %v2586, 1
      %v2588 = vmax.f32 %v2586, %v2587
      %v2589 = vsel %vm2534, %v2346, -inf
      %v2590 = vsel %vm2534, %v2352, -inf
      %v2591 = vmax.f32 %v2589, %v2590
      %v2592 = vrot.slane %v2591, 4
      %v2593 = vmax.f32 %v2591, %v2592
      %v2594 = vrot.slane %v2593, 2
      %v2595 = vmax.f32 %v2593, %v2594
      %v2596 = vrot.slane %v2595, 1
      %v2597 = vmax.f32 %v2595, %v2596
      %v2598 = vsel %vm2534, %v2347, -inf
      %v2599 = vsel %vm2534, %v2353, -inf
      %v2600 = vmax.f32 %v2598, %v2599
      %v2601 = vrot.slane %v2600, 4
      %v2602 = vmax.f32 %v2600, %v2601
      %v2603 = vrot.slane %v2602, 2
      %v2604 = vmax.f32 %v2602, %v2603
      %v2605 = vrot.slane %v2604, 1
      %v2606 = vmax.f32 %v2604, %v2605
      %v2607 = vsel %vm2534, %v2282, -inf
      %v2608 = vsel %vm2534, %v2284, -inf
      %v2609 = vmax.f32 %v2607, %v2608
      %v2610 = vrot.slane %v2609, 4
      %v2611 = vmax.f32 %v2609, %v2610
      %v2612 = vrot.slane %v2611, 2
      %v2613 = vmax.f32 %v2611, %v2612
      %v2614 = vrot.slane %v2613, 1
      %v2615 = vmax.f32 %v2613, %v2614
      %v2616 = vsel %vm2534, %v2354, -inf
      %v2617 = vsel %vm2534, %v2360, -inf
      %v2618 = vmax.f32 %v2616, %v2617
      %v2619 = vrot.slane %v2618, 4
      %v2620 = vmax.f32 %v2618, %v2619
      %v2621 = vrot.slane %v2620, 2
      %v2622 = vmax.f32 %v2620, %v2621
      %v2623 = vrot.slane %v2622, 1
      %v2624 = vmax.f32 %v2622, %v2623
      %v2625 = vsel %vm2534, %v2355, -inf
      %v2626 = vsel %vm2534, %v2361, -inf
      %v2627 = vmax.f32 %v2625, %v2626
      %v2628 = vrot.slane %v2627, 4
      %v2629 = vmax.f32 %v2627, %v2628
      %v2630 = vrot.slane %v2629, 2
      %v2631 = vmax.f32 %v2629, %v2630
      %v2632 = vrot.slane %v2631, 1
      %v2633 = vmax.f32 %v2631, %v2632
      %v2634 = vsel %vm2534, %v2356, -inf
      %v2635 = vsel %vm2534, %v2362, -inf
      %v2636 = vmax.f32 %v2634, %v2635
      %v2637 = vrot.slane %v2636, 4
      %v2638 = vmax.f32 %v2636, %v2637
      %v2639 = vrot.slane %v2638, 2
      %v2640 = vmax.f32 %v2638, %v2639
      %v2641 = vrot.slane %v2640, 1
      %v2642 = vmax.f32 %v2640, %v2641
      %v2643 = vsel %vm2534, %v2283, -inf
      %v2644 = vsel %vm2534, %v2285, -inf
      %v2645 = vmax.f32 %v2643, %v2644
      %v2646 = vrot.slane %v2645, 4
      %v2647 = vmax.f32 %v2645, %v2646
      %v2648 = vrot.slane %v2647, 2
      %v2649 = vmax.f32 %v2647, %v2648
      %v2650 = vrot.slane %v2649, 1
      %v2651 = vmax.f32 %v2649, %v2650
      %v2652 = vsel %vm2534, %v2357, -inf
      %v2653 = vsel %vm2534, %v2363, -inf
      %v2654 = vmax.f32 %v2652, %v2653
      %v2655 = vrot.slane %v2654, 4
      %v2656 = vmax.f32 %v2654, %v2655
      %v2657 = vrot.slane %v2656, 2
      %v2658 = vmax.f32 %v2656, %v2657
      %v2659 = vrot.slane %v2658, 1
      %v2660 = vmax.f32 %v2658, %v2659
      %v2661 = vsel %vm2534, %v2358, -inf
      %v2662 = vsel %vm2534, %v2364, -inf
      %v2663 = vmax.f32 %v2661, %v2662
      %v2664 = vrot.slane %v2663, 4
      %v2665 = vmax.f32 %v2663, %v2664
      %v2666 = vrot.slane %v2665, 2
      %v2667 = vmax.f32 %v2665, %v2666
      %v2668 = vrot.slane %v2667, 1
      %v2669 = vmax.f32 %v2667, %v2668
      %v2670 = vsel %vm2534, %v2359, -inf
      %v2671 = vsel %vm2534, %v2365, -inf
      %v2672 = vmax.f32 %v2670, %v2671
      %v2673 = vrot.slane %v2672, 4
      %v2674 = vmax.f32 %v2672, %v2673
      %v2675 = vrot.slane %v2674, 2
      %v2676 = vmax.f32 %v2674, %v2675
      %v2677 = vrot.slane %v2676, 1
      %v2678 = vmax.f32 %v2676, %v2677
      %v2679 = vsel %vm2534, %v2286, -inf
      %v2680 = vsel %vm2534, %v2288, -inf
      %v2681 = vmax.f32 %v2679, %v2680
      %v2682 = vrot.slane %v2681, 4
      %v2683 = vmax.f32 %v2681, %v2682
      %v2684 = vrot.slane %v2683, 2
      %v2685 = vmax.f32 %v2683, %v2684
      %v2686 = vrot.slane %v2685, 1
      %v2687 = vmax.f32 %v2685, %v2686
      %v2688 = vsel %vm2534, %v2366, -inf
      %v2689 = vsel %vm2534, %v2372, -inf
      %v2690 = vmax.f32 %v2688, %v2689
      %v2691 = vrot.slane %v2690, 4
      %v2692 = vmax.f32 %v2690, %v2691
      %v2693 = vrot.slane %v2692, 2
      %v2694 = vmax.f32 %v2692, %v2693
      %v2695 = vrot.slane %v2694, 1
      %v2696 = vmax.f32 %v2694, %v2695
      %v2697 = vsel %vm2534, %v2367, -inf
      %v2698 = vsel %vm2534, %v2373, -inf
      %v2699 = vmax.f32 %v2697, %v2698
      %v2700 = vrot.slane %v2699, 4
      %v2701 = vmax.f32 %v2699, %v2700
      %v2702 = vrot.slane %v2701, 2
      %v2703 = vmax.f32 %v2701, %v2702
      %v2704 = vrot.slane %v2703, 1
      %v2705 = vmax.f32 %v2703, %v2704
      %v2706 = vsel %vm2534, %v2368, -inf
      %v2707 = vsel %vm2534, %v2374, -inf
      %v2708 = vmax.f32 %v2706, %v2707
      %v2709 = vrot.slane %v2708, 4
      %v2710 = vmax.f32 %v2708, %v2709
      %v2711 = vrot.slane %v2710, 2
      %v2712 = vmax.f32 %v2710, %v2711
      %v2713 = vrot.slane %v2712, 1
      %v2714 = vmax.f32 %v2712, %v2713
      %v2715 = vsel %vm2534, %v2287, -inf
      %v2716 = vsel %vm2534, %v2289, -inf
      %v2717 = vmax.f32 %v2715, %v2716
      %v2718 = vrot.slane %v2717, 4
      %v2719 = vmax.f32 %v2717, %v2718
      %v2720 = vrot.slane %v2719, 2
      %v2721 = vmax.f32 %v2719, %v2720
      %v2722 = vrot.slane %v2721, 1
      %v2723 = vmax.f32 %v2721, %v2722
      %v2724 = vsel %vm2534, %v2369, -inf
      %v2725 = vsel %vm2534, %v2375, -inf
      %v2726 = vmax.f32 %v2724, %v2725
      %v2727 = vrot.slane %v2726, 4
      %v2728 = vmax.f32 %v2726, %v2727
      %v2729 = vrot.slane %v2728, 2
      %v2730 = vmax.f32 %v2728, %v2729
      %v2731 = vrot.slane %v2730, 1
      %v2732 = vmax.f32 %v2730, %v2731
      %v2733 = vsel %vm2534, %v2370, -inf
      %v2734 = vsel %vm2534, %v2376, -inf
      %v2735 = vmax.f32 %v2733, %v2734
      %v2736 = vrot.slane %v2735, 4
      %v2737 = vmax.f32 %v2735, %v2736
      %v2738 = vrot.slane %v2737, 2
      %v2739 = vmax.f32 %v2737, %v2738
      %v2740 = vrot.slane %v2739, 1
      %v2741 = vmax.f32 %v2739, %v2740
      %v2742 = vsel %vm2534, %v2371, -inf
      %v2743 = vsel %vm2534, %v2377, -inf
      %v2744 = vmax.f32 %v2742, %v2743
      %v2745 = vrot.slane %v2744, 4
      %v2746 = vmax.f32 %v2744, %v2745
      %v2747 = vrot.slane %v2746, 2
      %v2748 = vmax.f32 %v2746, %v2747
      %v2749 = vrot.slane %v2748, 1
      %v2750 = vmax.f32 %v2748, %v2749
      %v2751 = vsel %vm2534, %v2290, -inf
      %v2752 = vsel %vm2534, %v2292, -inf
      %v2753 = vmax.f32 %v2751, %v2752
      %v2754 = vrot.slane %v2753, 4
      %v2755 = vmax.f32 %v2753, %v2754
      %v2756 = vrot.slane %v2755, 2
      %v2757 = vmax.f32 %v2755, %v2756
      %v2758 = vrot.slane %v2757, 1
      %v2759 = vmax.f32 %v2757, %v2758
      %v2760 = vsel %vm2534, %v2378, -inf
      %v2761 = vsel %vm2534, %v2384, -inf
      %v2762 = vmax.f32 %v2760, %v2761
      %v2763 = vrot.slane %v2762, 4
      %v2764 = vmax.f32 %v2762, %v2763
      %v2765 = vrot.slane %v2764, 2
      %v2766 = vmax.f32 %v2764, %v2765
      %v2767 = vrot.slane %v2766, 1
      %v2768 = vmax.f32 %v2766, %v2767
      %v2769 = vsel %vm2534, %v2379, -inf
      %v2770 = vsel %vm2534, %v2385, -inf
      %v2771 = vmax.f32 %v2769, %v2770
      %v2772 = vrot.slane %v2771, 4
      %v2773 = vmax.f32 %v2771, %v2772
      %v2774 = vrot.slane %v2773, 2
      %v2775 = vmax.f32 %v2773, %v2774
      %v2776 = vrot.slane %v2775, 1
      %v2777 = vmax.f32 %v2775, %v2776
      %v2778 = vsel %vm2534, %v2380, -inf
      %v2779 = vsel %vm2534, %v2386, -inf
      %v2780 = vmax.f32 %v2778, %v2779
      %v2781 = vrot.slane %v2780, 4
      %v2782 = vmax.f32 %v2780, %v2781
      %v2783 = vrot.slane %v2782, 2
      %v2784 = vmax.f32 %v2782, %v2783
      %v2785 = vrot.slane %v2784, 1
      %v2786 = vmax.f32 %v2784, %v2785
      %v2787 = vsel %vm2534, %v2291, -inf
      %v2788 = vsel %vm2534, %v2293, -inf
      %v2789 = vmax.f32 %v2787, %v2788
      %v2790 = vrot.slane %v2789, 4
      %v2791 = vmax.f32 %v2789, %v2790
      %v2792 = vrot.slane %v2791, 2
      %v2793 = vmax.f32 %v2791, %v2792
      %v2794 = vrot.slane %v2793, 1
      %v2795 = vmax.f32 %v2793, %v2794
      %v2796 = vsel %vm2534, %v2381, -inf
      %v2797 = vsel %vm2534, %v2387, -inf
      %v2798 = vmax.f32 %v2796, %v2797
      %v2799 = vrot.slane %v2798, 4
      %v2800 = vmax.f32 %v2798, %v2799
      %v2801 = vrot.slane %v2800, 2
      %v2802 = vmax.f32 %v2800, %v2801
      %v2803 = vrot.slane %v2802, 1
      %v2804 = vmax.f32 %v2802, %v2803
      %v2805 = vsel %vm2534, %v2382, -inf
      %v2806 = vsel %vm2534, %v2388, -inf
      %v2807 = vmax.f32 %v2805, %v2806
      %v2808 = vrot.slane %v2807, 4
      %v2809 = vmax.f32 %v2807, %v2808
      %v2810 = vrot.slane %v2809, 2
      %v2811 = vmax.f32 %v2809, %v2810
      %v2812 = vrot.slane %v2811, 1
      %v2813 = vmax.f32 %v2811, %v2812
      %v2814 = vsel %vm2534, %v2383, -inf
      %v2815 = vsel %vm2534, %v2389, -inf
      %v2816 = vmax.f32 %v2814, %v2815
      %v2817 = vrot.slane %v2816, 4
      %v2818 = vmax.f32 %v2816, %v2817
      %v2819 = vrot.slane %v2818, 2
      %v2820 = vmax.f32 %v2818, %v2819
      %v2821 = vrot.slane %v2820, 1
      %v2822 = vmax.f32 %v2820, %v2821
      %v2823 = vsel %vm2534, %v2294, -inf
      %v2824 = vsel %vm2534, %v2296, -inf
      %v2825 = vmax.f32 %v2823, %v2824
      %v2826 = vrot.slane %v2825, 4
      %v2827 = vmax.f32 %v2825, %v2826
      %v2828 = vrot.slane %v2827, 2
      %v2829 = vmax.f32 %v2827, %v2828
      %v2830 = vrot.slane %v2829, 1
      %v2831 = vmax.f32 %v2829, %v2830
      %v2832 = vsel %vm2534, %v2390, -inf
      %v2833 = vsel %vm2534, %v2396, -inf
      %v2834 = vmax.f32 %v2832, %v2833
      %v2835 = vrot.slane %v2834, 4
      %v2836 = vmax.f32 %v2834, %v2835
      %v2837 = vrot.slane %v2836, 2
      %v2838 = vmax.f32 %v2836, %v2837
      %v2839 = vrot.slane %v2838, 1
      %v2840 = vmax.f32 %v2838, %v2839
      %v2841 = vsel %vm2534, %v2391, -inf
      %v2842 = vsel %vm2534, %v2397, -inf
      %v2843 = vmax.f32 %v2841, %v2842
      %v2844 = vrot.slane %v2843, 4
      %v2845 = vmax.f32 %v2843, %v2844
      %v2846 = vrot.slane %v2845, 2
      %v2847 = vmax.f32 %v2845, %v2846
      %v2848 = vrot.slane %v2847, 1
      %v2849 = vmax.f32 %v2847, %v2848
      %v2850 = vsel %vm2534, %v2392, -inf
      %v2851 = vsel %vm2534, %v2398, -inf
      %v2852 = vmax.f32 %v2850, %v2851
      %v2853 = vrot.slane %v2852, 4
      %v2854 = vmax.f32 %v2852, %v2853
      %v2855 = vrot.slane %v2854, 2
      %v2856 = vmax.f32 %v2854, %v2855
      %v2857 = vrot.slane %v2856, 1
      %v2858 = vmax.f32 %v2856, %v2857
      %v2859 = vsel %vm2534, %v2295, -inf
      %v2860 = vsel %vm2534, %v2297, -inf
      %v2861 = vmax.f32 %v2859, %v2860
      %v2862 = vrot.slane %v2861, 4
      %v2863 = vmax.f32 %v2861, %v2862
      %v2864 = vrot.slane %v2863, 2
      %v2865 = vmax.f32 %v2863, %v2864
      %v2866 = vrot.slane %v2865, 1
      %v2867 = vmax.f32 %v2865, %v2866
      %v2868 = vsel %vm2534, %v2393, -inf
      %v2869 = vsel %vm2534, %v2399, -inf
      %v2870 = vmax.f32 %v2868, %v2869
      %v2871 = vrot.slane %v2870, 4
      %v2872 = vmax.f32 %v2870, %v2871
      %v2873 = vrot.slane %v2872, 2
      %v2874 = vmax.f32 %v2872, %v2873
      %v2875 = vrot.slane %v2874, 1
      %v2876 = vmax.f32 %v2874, %v2875
      %v2877 = vsel %vm2534, %v2394, -inf
      %v2878 = vsel %vm2534, %v2400, -inf
      %v2879 = vmax.f32 %v2877, %v2878
      %v2880 = vrot.slane %v2879, 4
      %v2881 = vmax.f32 %v2879, %v2880
      %v2882 = vrot.slane %v2881, 2
      %v2883 = vmax.f32 %v2881, %v2882
      %v2884 = vrot.slane %v2883, 1
      %v2885 = vmax.f32 %v2883, %v2884
      %v2886 = vsel %vm2534, %v2395, -inf
      %v2887 = vsel %vm2534, %v2401, -inf
      %v2888 = vmax.f32 %v2886, %v2887
      %v2889 = vrot.slane %v2888, 4
      %v2890 = vmax.f32 %v2888, %v2889
      %v2891 = vrot.slane %v2890, 2
      %v2892 = vmax.f32 %v2890, %v2891
      %v2893 = vrot.slane %v2892, 1
      %v2894 = vmax.f32 %v2892, %v2893
      %v2895 = vsel %vm2534, %v2298, -inf
      %v2896 = vsel %vm2534, %v2300, -inf
      %v2897 = vmax.f32 %v2895, %v2896
      %v2898 = vrot.slane %v2897, 4
      %v2899 = vmax.f32 %v2897, %v2898
      %v2900 = vrot.slane %v2899, 2
      %v2901 = vmax.f32 %v2899, %v2900
      %v2902 = vrot.slane %v2901, 1
      %v2903 = vmax.f32 %v2901, %v2902
      %v2904 = vsel %vm2534, %v2402, -inf
      %v2905 = vsel %vm2534, %v2408, -inf
      %v2906 = vmax.f32 %v2904, %v2905
      %v2907 = vrot.slane %v2906, 4
      %v2908 = vmax.f32 %v2906, %v2907
      %v2909 = vrot.slane %v2908, 2
      %v2910 = vmax.f32 %v2908, %v2909
      %v2911 = vrot.slane %v2910, 1
      %v2912 = vmax.f32 %v2910, %v2911
      %v2913 = vsel %vm2534, %v2403, -inf
      %v2914 = vsel %vm2534, %v2409, -inf
      %v2915 = vmax.f32 %v2913, %v2914
      %v2916 = vrot.slane %v2915, 4
      %v2917 = vmax.f32 %v2915, %v2916
      %v2918 = vrot.slane %v2917, 2
      %v2919 = vmax.f32 %v2917, %v2918
      %v2920 = vrot.slane %v2919, 1
      %v2921 = vmax.f32 %v2919, %v2920
      %v2922 = vsel %vm2534, %v2404, -inf
      %v2923 = vsel %vm2534, %v2410, -inf
      %v2924 = vmax.f32 %v2922, %v2923
      %v2925 = vrot.slane %v2924, 4
      %v2926 = vmax.f32 %v2924, %v2925
      %v2927 = vrot.slane %v2926, 2
      %v2928 = vmax.f32 %v2926, %v2927
      %v2929 = vrot.slane %v2928, 1
      %v2930 = vmax.f32 %v2928, %v2929
      %v2931 = vsel %vm2534, %v2299, -inf
      %v2932 = vsel %vm2534, %v2301, -inf
      %v2933 = vmax.f32 %v2931, %v2932
      %v2934 = vrot.slane %v2933, 4
      %v2935 = vmax.f32 %v2933, %v2934
      %v2936 = vrot.slane %v2935, 2
      %v2937 = vmax.f32 %v2935, %v2936
      %v2938 = vrot.slane %v2937, 1
      %v2939 = vmax.f32 %v2937, %v2938
      %v2940 = vsel %vm2534, %v2405, -inf
      %v2941 = vsel %vm2534, %v2411, -inf
      %v2942 = vmax.f32 %v2940, %v2941
      %v2943 = vrot.slane %v2942, 4
      %v2944 = vmax.f32 %v2942, %v2943
      %v2945 = vrot.slane %v2944, 2
      %v2946 = vmax.f32 %v2944, %v2945
      %v2947 = vrot.slane %v2946, 1
      %v2948 = vmax.f32 %v2946, %v2947
      %v2949 = vsel %vm2534, %v2406, -inf
      %v2950 = vsel %vm2534, %v2412, -inf
      %v2951 = vmax.f32 %v2949, %v2950
      %v2952 = vrot.slane %v2951, 4
      %v2953 = vmax.f32 %v2951, %v2952
      %v2954 = vrot.slane %v2953, 2
      %v2955 = vmax.f32 %v2953, %v2954
      %v2956 = vrot.slane %v2955, 1
      %v2957 = vmax.f32 %v2955, %v2956
      %v2958 = vsel %vm2534, %v2407, -inf
      %v2959 = vsel %vm2534, %v2413, -inf
      %v2960 = vmax.f32 %v2958, %v2959
      %v2961 = vrot.slane %v2960, 4
      %v2962 = vmax.f32 %v2960, %v2961
      %v2963 = vrot.slane %v2962, 2
      %v2964 = vmax.f32 %v2962, %v2963
      %v2965 = vrot.slane %v2964, 1
      %v2966 = vmax.f32 %v2964, %v2965
      %v2967 = vsel %vm2534, %v2302, -inf
      %v2968 = vsel %vm2534, %v2304, -inf
      %v2969 = vmax.f32 %v2967, %v2968
      %v2970 = vrot.slane %v2969, 4
      %v2971 = vmax.f32 %v2969, %v2970
      %v2972 = vrot.slane %v2971, 2
      %v2973 = vmax.f32 %v2971, %v2972
      %v2974 = vrot.slane %v2973, 1
      %v2975 = vmax.f32 %v2973, %v2974
      %v2976 = vsel %vm2534, %v2414, -inf
      %v2977 = vsel %vm2534, %v2420, -inf
      %v2978 = vmax.f32 %v2976, %v2977
      %v2979 = vrot.slane %v2978, 4
      %v2980 = vmax.f32 %v2978, %v2979
      %v2981 = vrot.slane %v2980, 2
      %v2982 = vmax.f32 %v2980, %v2981
      %v2983 = vrot.slane %v2982, 1
      %v2984 = vmax.f32 %v2982, %v2983
      %v2985 = vsel %vm2534, %v2415, -inf
      %v2986 = vsel %vm2534, %v2421, -inf
      %v2987 = vmax.f32 %v2985, %v2986
      %v2988 = vrot.slane %v2987, 4
      %v2989 = vmax.f32 %v2987, %v2988
      %v2990 = vrot.slane %v2989, 2
      %v2991 = vmax.f32 %v2989, %v2990
      %v2992 = vrot.slane %v2991, 1
      %v2993 = vmax.f32 %v2991, %v2992
      %v2994 = vsel %vm2534, %v2416, -inf
      %v2995 = vsel %vm2534, %v2422, -inf
      %v2996 = vmax.f32 %v2994, %v2995
      %v2997 = vrot.slane %v2996, 4
      %v2998 = vmax.f32 %v2996, %v2997
      %v2999 = vrot.slane %v2998, 2
      %v3000 = vmax.f32 %v2998, %v2999
      %v3001 = vrot.slane %v3000, 1
      %v3002 = vmax.f32 %v3000, %v3001
      %v3003 = vsel %vm2534, %v2303, -inf
      %v3004 = vsel %vm2534, %v2305, -inf
      %v3005 = vmax.f32 %v3003, %v3004
      %v3006 = vrot.slane %v3005, 4
      %v3007 = vmax.f32 %v3005, %v3006
      %v3008 = vrot.slane %v3007, 2
      %v3009 = vmax.f32 %v3007, %v3008
      %v3010 = vrot.slane %v3009, 1
      %v3011 = vmax.f32 %v3009, %v3010
      %v3012 = vsel %vm2534, %v2417, -inf
      %v3013 = vsel %vm2534, %v2423, -inf
      %v3014 = vmax.f32 %v3012, %v3013
      %v3015 = vrot.slane %v3014, 4
      %v3016 = vmax.f32 %v3014, %v3015
      %v3017 = vrot.slane %v3016, 2
      %v3018 = vmax.f32 %v3016, %v3017
      %v3019 = vrot.slane %v3018, 1
      %v3020 = vmax.f32 %v3018, %v3019
      %v3021 = vsel %vm2534, %v2418, -inf
      %v3022 = vsel %vm2534, %v2424, -inf
      %v3023 = vmax.f32 %v3021, %v3022
      %v3024 = vrot.slane %v3023, 4
      %v3025 = vmax.f32 %v3023, %v3024
      %v3026 = vrot.slane %v3025, 2
      %v3027 = vmax.f32 %v3025, %v3026
      %v3028 = vrot.slane %v3027, 1
      %v3029 = vmax.f32 %v3027, %v3028
      %v3030 = vsel %vm2534, %v2419, -inf
      %v3031 = vsel %vm2534, %v2425, -inf
      %v3032 = vmax.f32 %v3030, %v3031
      %v3033 = vrot.slane %v3032, 4
      %v3034 = vmax.f32 %v3032, %v3033
      %v3035 = vrot.slane %v3034, 2
      %v3036 = vmax.f32 %v3034, %v3035
      %v3037 = vrot.slane %v3036, 1
      %v3038 = vmax.f32 %v3036, %v3037
      %v3039 = vsel %vm2534, %v2306, -inf
      %v3040 = vsel %vm2534, %v2308, -inf
      %v3041 = vmax.f32 %v3039, %v3040
      %v3042 = vrot.slane %v3041, 4
      %v3043 = vmax.f32 %v3041, %v3042
      %v3044 = vrot.slane %v3043, 2
      %v3045 = vmax.f32 %v3043, %v3044
      %v3046 = vrot.slane %v3045, 1
      %v3047 = vmax.f32 %v3045, %v3046
      %v3048 = vsel %vm2534, %v2426, -inf
      %v3049 = vsel %vm2534, %v2432, -inf
      %v3050 = vmax.f32 %v3048, %v3049
      %v3051 = vrot.slane %v3050, 4
      %v3052 = vmax.f32 %v3050, %v3051
      %v3053 = vrot.slane %v3052, 2
      %v3054 = vmax.f32 %v3052, %v3053
      %v3055 = vrot.slane %v3054, 1
      %v3056 = vmax.f32 %v3054, %v3055
      %v3057 = vsel %vm2534, %v2427, -inf
      %v3058 = vsel %vm2534, %v2433, -inf
      %v3059 = vmax.f32 %v3057, %v3058
      %v3060 = vrot.slane %v3059, 4
      %v3061 = vmax.f32 %v3059, %v3060
      %v3062 = vrot.slane %v3061, 2
      %v3063 = vmax.f32 %v3061, %v3062
      %v3064 = vrot.slane %v3063, 1
      %v3065 = vmax.f32 %v3063, %v3064
      %v3066 = vsel %vm2534, %v2428, -inf
      %v3067 = vsel %vm2534, %v2434, -inf
      %v3068 = vmax.f32 %v3066, %v3067
      %v3069 = vrot.slane %v3068, 4
      %v3070 = vmax.f32 %v3068, %v3069
      %v3071 = vrot.slane %v3070, 2
      %v3072 = vmax.f32 %v3070, %v3071
      %v3073 = vrot.slane %v3072, 1
      %v3074 = vmax.f32 %v3072, %v3073
      %v3075 = vsel %vm2534, %v2307, -inf
      %v3076 = vsel %vm2534, %v2309, -inf
      %v3077 = vmax.f32 %v3075, %v3076
      %v3078 = vrot.slane %v3077, 4
      %v3079 = vmax.f32 %v3077, %v3078
      %v3080 = vrot.slane %v3079, 2
      %v3081 = vmax.f32 %v3079, %v3080
      %v3082 = vrot.slane %v3081, 1
      %v3083 = vmax.f32 %v3081, %v3082
      %v3084 = vsel %vm2534, %v2429, -inf
      %v3085 = vsel %vm2534, %v2435, -inf
      %v3086 = vmax.f32 %v3084, %v3085
      %v3087 = vrot.slane %v3086, 4
      %v3088 = vmax.f32 %v3086, %v3087
      %v3089 = vrot.slane %v3088, 2
      %v3090 = vmax.f32 %v3088, %v3089
      %v3091 = vrot.slane %v3090, 1
      %v3092 = vmax.f32 %v3090, %v3091
      %v3093 = vsel %vm2534, %v2430, -inf
      %v3094 = vsel %vm2534, %v2436, -inf
      %v3095 = vmax.f32 %v3093, %v3094
      %v3096 = vrot.slane %v3095, 4
      %v3097 = vmax.f32 %v3095, %v3096
      %v3098 = vrot.slane %v3097, 2
      %v3099 = vmax.f32 %v3097, %v3098
      %v3100 = vrot.slane %v3099, 1
      %v3101 = vmax.f32 %v3099, %v3100
      %v3102 = vsel %vm2534, %v2431, -inf
      %v3103 = vsel %vm2534, %v2437, -inf
      %v3104 = vmax.f32 %v3102, %v3103
      %v3105 = vrot.slane %v3104, 4
      %v3106 = vmax.f32 %v3104, %v3105
      %v3107 = vrot.slane %v3106, 2
      %v3108 = vmax.f32 %v3106, %v3107
      %v3109 = vrot.slane %v3108, 1
      %v3110 = vmax.f32 %v3108, %v3109
      %v3111 = vpack.c.bf16 %v2543, %v2543
      %v3112 = vpack.c.bf16 %v2552, %v2552
      %v3113 = vpack.c.bf16 %v2561, %v2561
      %v3114 = vpack.c.bf16 %v2570, %v2570
      %v3115 = vpack.c.bf16 %v2579, %v2579
      %v3116 = vpack.c.bf16 %v2588, %v2588
      %v3117 = vpack.c.bf16 %v2597, %v2597
      %v3118 = vpack.c.bf16 %v2606, %v2606
      %v3119 = vpack.c.bf16 %v2615, %v2615
      %v3120 = vpack.c.bf16 %v2624, %v2624
      %v3121 = vpack.c.bf16 %v2633, %v2633
      %v3122 = vpack.c.bf16 %v2642, %v2642
      %v3123 = vpack.c.bf16 %v2651, %v2651
      %v3124 = vpack.c.bf16 %v2660, %v2660
      %v3125 = vpack.c.bf16 %v2669, %v2669
      %v3126 = vpack.c.bf16 %v2678, %v2678
      %v3127 = vpack.c.bf16 %v2687, %v2687
      %v3128 = vpack.c.bf16 %v2696, %v2696
      %v3129 = vpack.c.bf16 %v2705, %v2705
      %v3130 = vpack.c.bf16 %v2714, %v2714
      %v3131 = vpack.c.bf16 %v2723, %v2723
      %v3132 = vpack.c.bf16 %v2732, %v2732
      %v3133 = vpack.c.bf16 %v2741, %v2741
      %v3134 = vpack.c.bf16 %v2750, %v2750
      %v3135 = vpack.c.bf16 %v2759, %v2759
      %v3136 = vpack.c.bf16 %v2768, %v2768
      %v3137 = vpack.c.bf16 %v2777, %v2777
      %v3138 = vpack.c.bf16 %v2786, %v2786
      %v3139 = vpack.c.bf16 %v2795, %v2795
      %v3140 = vpack.c.bf16 %v2804, %v2804
      %v3141 = vpack.c.bf16 %v2813, %v2813
      %v3142 = vpack.c.bf16 %v2822, %v2822
      %v3143 = vpack.c.bf16 %v2831, %v2831
      %v3144 = vpack.c.bf16 %v2840, %v2840
      %v3145 = vpack.c.bf16 %v2849, %v2849
      %v3146 = vpack.c.bf16 %v2858, %v2858
      %v3147 = vpack.c.bf16 %v2867, %v2867
      %v3148 = vpack.c.bf16 %v2876, %v2876
      %v3149 = vpack.c.bf16 %v2885, %v2885
      %v3150 = vpack.c.bf16 %v2894, %v2894
      %v3151 = vpack.c.bf16 %v2903, %v2903
      %v3152 = vpack.c.bf16 %v2912, %v2912
      %v3153 = vpack.c.bf16 %v2921, %v2921
      %v3154 = vpack.c.bf16 %v2930, %v2930
      %v3155 = vpack.c.bf16 %v2939, %v2939
      %v3156 = vpack.c.bf16 %v2948, %v2948
      %v3157 = vpack.c.bf16 %v2957, %v2957
      %v3158 = vpack.c.bf16 %v2966, %v2966
      %v3159 = vpack.c.bf16 %v2975, %v2975
      %v3160 = vpack.c.bf16 %v2984, %v2984
      %v3161 = vpack.c.bf16 %v2993, %v2993
      %v3162 = vpack.c.bf16 %v3002, %v3002
      %v3163 = vpack.c.bf16 %v3011, %v3011
      %v3164 = vpack.c.bf16 %v3020, %v3020
      %v3165 = vpack.c.bf16 %v3029, %v3029
      %v3166 = vpack.c.bf16 %v3038, %v3038
      %v3167 = vpack.c.bf16 %v3047, %v3047
      %v3168 = vpack.c.bf16 %v3056, %v3056
      %v3169 = vpack.c.bf16 %v3065, %v3065
      %v3170 = vpack.c.bf16 %v3074, %v3074
      %v3171 = vpack.c.bf16 %v3083, %v3083
      %v3172 = vpack.c.bf16 %v3092, %v3092
      %v3173 = vpack.c.bf16 %v3101, %v3101
      %v3174 = vpack.c.bf16 %v3110, %v3110
      %vm3175 = vcmask 60416
      %3176 = vst.msk [vmem:[%s170] sm:$0xf] %vm3175, 0
      %vm3177 = vcmask 57344
      %3178 = vst.msk [vmem:[%s170 + $0x4] sm:$0x1] %vm3177, 0
      %3179 = vst.msk [vmem:[%s170 + $0x8] sm:$0xf] %vm3175, 0
      %3180 = vst.msk [vmem:[%s170 + $0xc] sm:$0x1] %vm3177, 0
      %3181 = vst.msk [vmem:[%s170 + $0x10] sm:$0xf] %vm3175, 0
      %3182 = vst.msk [vmem:[%s170 + $0x14] sm:$0x1] %vm3177, 0
      %3183 = vst.msk [vmem:[%s170 + $0x18] sm:$0xf] %vm3175, 0
      %3184 = vst.msk [vmem:[%s170 + $0x1c] sm:$0x1] %vm3177, 0
      %3185 = vst.msk [vmem:[%s170 + $0x20] sm:$0xf] %vm3175, 0
      %3186 = vst.msk [vmem:[%s170 + $0x24] sm:$0x1] %vm3177, 0
      %3187 = vst.msk [vmem:[%s170 + $0x28] sm:$0xf] %vm3175, 0
      %3188 = vst.msk [vmem:[%s170 + $0x2c] sm:$0x1] %vm3177, 0
      %3189 = vst.msk [vmem:[%s170 + $0x30] sm:$0xf] %vm3175, 0
      %3190 = vst.msk [vmem:[%s170 + $0x34] sm:$0x1] %vm3177, 0
      %3191 = vst.msk [vmem:[%s170 + $0x38] sm:$0xf] %vm3175, 0
      %3192 = vst.msk [vmem:[%s170 + $0x3c] sm:$0x1] %vm3177, 0
      %3193 = vst.msk [vmem:[%s170 + $0x40] sm:$0xf] %vm3175, 0
      %3194 = vst.msk [vmem:[%s170 + $0x44] sm:$0x1] %vm3177, 0
      %3195 = vst.msk [vmem:[%s170 + $0x48] sm:$0xf] %vm3175, 0
      %3196 = vst.msk [vmem:[%s170 + $0x4c] sm:$0x1] %vm3177, 0
      %v3261 = vunpack.c.l.b16 %v3111
      %v3262 = vunpack.c.l.b16 %v3112
      %v3263 = vunpack.c.l.b16 %v3113
      %v3264 = vunpack.c.l.b16 %v3114
      %v3265 = vunpack.c.l.b16 %v3115
      %v3266 = vunpack.c.l.b16 %v3116
      %v3267 = vunpack.c.l.b16 %v3117
      %v3268 = vunpack.c.l.b16 %v3118
      %v3269 = vunpack.c.l.b16 %v3119
      %v3270 = vunpack.c.l.b16 %v3120
      %v3271 = vunpack.c.l.b16 %v3121
      %v3272 = vunpack.c.l.b16 %v3122
      %v3273 = vunpack.c.l.b16 %v3123
      %v3274 = vunpack.c.l.b16 %v3124
      %v3275 = vunpack.c.l.b16 %v3125
      %v3276 = vunpack.c.l.b16 %v3126
      %v3277 = vunpack.c.l.b16 %v3127
      %v3278 = vunpack.c.l.b16 %v3128
      %v3279 = vunpack.c.l.b16 %v3129
      %v3280 = vunpack.c.l.b16 %v3130
      %v3281 = vunpack.c.l.b16 %v3131
      %v3282 = vunpack.c.l.b16 %v3132
      %v3283 = vunpack.c.l.b16 %v3133
      %v3284 = vunpack.c.l.b16 %v3134
      %v3285 = vunpack.c.l.b16 %v3135
      %v3286 = vunpack.c.l.b16 %v3136
      %v3287 = vunpack.c.l.b16 %v3137
      %v3288 = vunpack.c.l.b16 %v3138
      %v3289 = vunpack.c.l.b16 %v3139
      %v3290 = vunpack.c.l.b16 %v3140
      %v3291 = vunpack.c.l.b16 %v3141
      %v3292 = vunpack.c.l.b16 %v3142
      %v3293 = vunpack.c.l.b16 %v3143
      %v3294 = vunpack.c.l.b16 %v3144
      %v3295 = vunpack.c.l.b16 %v3145
      %v3296 = vunpack.c.l.b16 %v3146
      %v3297 = vunpack.c.l.b16 %v3147
      %v3298 = vunpack.c.l.b16 %v3148
      %v3299 = vunpack.c.l.b16 %v3149
      %v3300 = vunpack.c.l.b16 %v3150
      %v3301 = vunpack.c.l.b16 %v3151
      %v3302 = vunpack.c.l.b16 %v3152
      %v3303 = vunpack.c.l.b16 %v3153
      %v3304 = vunpack.c.l.b16 %v3154
      %v3305 = vunpack.c.l.b16 %v3155
      %v3306 = vunpack.c.l.b16 %v3156
      %v3307 = vunpack.c.l.b16 %v3157
      %v3308 = vunpack.c.l.b16 %v3158
      %v3309 = vunpack.c.l.b16 %v3159
      %v3310 = vunpack.c.l.b16 %v3160
      %v3311 = vunpack.c.l.b16 %v3161
      %v3312 = vunpack.c.l.b16 %v3162
      %v3313 = vunpack.c.l.b16 %v3163
      %v3314 = vunpack.c.l.b16 %v3164
      %v3315 = vunpack.c.l.b16 %v3165
      %v3316 = vunpack.c.l.b16 %v3166
      %v3317 = vunpack.c.l.b16 %v3167
      %v3318 = vunpack.c.l.b16 %v3168
      %v3319 = vunpack.c.l.b16 %v3169
      %v3320 = vunpack.c.l.b16 %v3170
      %v3321 = vunpack.c.l.b16 %v3171
      %v3322 = vunpack.c.l.b16 %v3172
      %v3323 = vunpack.c.l.b16 %v3173
      %v3324 = vunpack.c.l.b16 %v3174
      %vm3325 = vcmask 1042434
      %v3326 = vsel %vm3325, %v3262, %v3261
      %vm3327 = vcmask 1043459
      %v3328 = vsel %vm3327, %v3263, %v3326
      %vm3329 = vcmask 1044484
      %v3330 = vsel %vm3329, %v3264, %v3328
      %vm3331 = vcmask 1045509
      %v3332 = vsel %vm3331, %v3265, %v3330
      %vm3333 = vcmask 1046534
      %v3334 = vsel %vm3333, %v3266, %v3332
      %vm3335 = vcmask 1047559
      %v3336 = vsel %vm3335, %v3267, %v3334
      %v3337 = vsel %vm3325, %v3270, %v3269
      %v3338 = vsel %vm3327, %v3271, %v3337
      %v3339 = vsel %vm3329, %v3272, %v3338
      %v3340 = vsel %vm3331, %v3273, %v3339
      %v3341 = vsel %vm3333, %v3274, %v3340
      %v3342 = vsel %vm3335, %v3275, %v3341
      %v3343 = vsel %vm3325, %v3278, %v3277
      %v3344 = vsel %vm3327, %v3279, %v3343
      %v3345 = vsel %vm3329, %v3280, %v3344
      %v3346 = vsel %vm3331, %v3281, %v3345
      %v3347 = vsel %vm3333, %v3282, %v3346
      %v3348 = vsel %vm3335, %v3283, %v3347
      %v3349 = vsel %vm3325, %v3286, %v3285
      %v3350 = vsel %vm3327, %v3287, %v3349
      %v3351 = vsel %vm3329, %v3288, %v3350
      %v3352 = vsel %vm3331, %v3289, %v3351
      %v3353 = vsel %vm3333, %v3290, %v3352
      %v3354 = vsel %vm3335, %v3291, %v3353
      %v3355 = vsel %vm3325, %v3294, %v3293
      %v3356 = vsel %vm3327, %v3295, %v3355
      %v3357 = vsel %vm3329, %v3296, %v3356
      %v3358 = vsel %vm3331, %v3297, %v3357
      %v3359 = vsel %vm3333, %v3298, %v3358
      %v3360 = vsel %vm3335, %v3299, %v3359
      %v3361 = vsel %vm3325, %v3302, %v3301
      %v3362 = vsel %vm3327, %v3303, %v3361
      %v3363 = vsel %vm3329, %v3304, %v3362
      %v3364 = vsel %vm3331, %v3305, %v3363
      %v3365 = vsel %vm3333, %v3306, %v3364
      %v3366 = vsel %vm3335, %v3307, %v3365
      %v3367 = vsel %vm3325, %v3310, %v3309
      %v3368 = vsel %vm3327, %v3311, %v3367
      %v3369 = vsel %vm3329, %v3312, %v3368
      %v3370 = vsel %vm3331, %v3313, %v3369
      %v3371 = vsel %vm3333, %v3314, %v3370
      %v3372 = vsel %vm3335, %v3315, %v3371
      %v3373 = vsel %vm3325, %v3318, %v3317
      %v3374 = vsel %vm3327, %v3319, %v3373
      %v3375 = vsel %vm3329, %v3320, %v3374
      %v3376 = vsel %vm3331, %v3321, %v3375
      %v3377 = vsel %vm3333, %v3322, %v3376
      %v3378 = vsel %vm3335, %v3323, %v3377
      %v3379 = vpack.c.b16 %v3336, %v3336
      %v3380 = vpack.c.b16 %v3268, %v3268
      %v3381 = vpack.c.b16 %v3342, %v3342
      %v3382 = vpack.c.b16 %v3276, %v3276
      %v3383 = vpack.c.b16 %v3348, %v3348
      %v3384 = vpack.c.b16 %v3284, %v3284
      %v3385 = vpack.c.b16 %v3354, %v3354
      %v3386 = vpack.c.b16 %v3292, %v3292
      %v3387 = vpack.c.b16 %v3360, %v3360
      %v3388 = vpack.c.b16 %v3300, %v3300
      %v3389 = vpack.c.b16 %v3366, %v3366
      %v3390 = vpack.c.b16 %v3308, %v3308
      %v3391 = vpack.c.b16 %v3372, %v3372
      %v3392 = vpack.c.b16 %v3316, %v3316
      %v3393 = vpack.c.b16 %v3378, %v3378
      %v3394 = vpack.c.b16 %v3324, %v3324
      %s3411 = scalar_lea.vmem %s170, 8
      %vm3412 = vcmask 60416
      %vm3413 = vsmask.f32 7938
      %vm3414 = vmand %vm3412, %vm3413
      %v3415 = vld [vmem:[%s3411] sm:$0xf]
      %v3416 = vsel %vm3414, %v3379, %v3415
      %3417 = vst [vmem:[%s3411] sm:$0xf] %v3416
      %vm3418 = vcmask 57344
      %vm3419 = vsmask.f32 256
      %vm3420 = vmand %vm3418, %vm3419
      %v3421 = vld [vmem:[%s3411 + $0x4] sm:$0x1]
      %v3422 = vsel %vm3420, %v3380, %v3421
      %3423 = vst [vmem:[%s3411 + $0x4] sm:$0x1] %v3422
      %v3424 = vld [vmem:[%s3411 + $0x8] sm:$0xf]
      %v3425 = vsel %vm3414, %v3381, %v3424
      %3426 = vst [vmem:[%s3411 + $0x8] sm:$0xf] %v3425
      %v3427 = vld [vmem:[%s3411 + $0xc] sm:$0x1]
      %v3428 = vsel %vm3420, %v3382, %v3427
      %3429 = vst [vmem:[%s3411 + $0xc] sm:$0x1] %v3428
      %v3430 = vld [vmem:[%s3411 + $0x10] sm:$0xf]
      %v3431 = vsel %vm3414, %v3383, %v3430
      %3432 = vst [vmem:[%s3411 + $0x10] sm:$0xf] %v3431
      %v3433 = vld [vmem:[%s3411 + $0x14] sm:$0x1]
      %v3434 = vsel %vm3420, %v3384, %v3433
      %3435 = vst [vmem:[%s3411 + $0x14] sm:$0x1] %v3434
      %v3436 = vld [vmem:[%s3411 + $0x18] sm:$0xf]
      %v3437 = vsel %vm3414, %v3385, %v3436
      %3438 = vst [vmem:[%s3411 + $0x18] sm:$0xf] %v3437
      %v3439 = vld [vmem:[%s3411 + $0x1c] sm:$0x1]
      %v3440 = vsel %vm3420, %v3386, %v3439
      %3441 = vst [vmem:[%s3411 + $0x1c] sm:$0x1] %v3440
      %v3442 = vld [vmem:[%s3411 + $0x20] sm:$0xf]
      %v3443 = vsel %vm3414, %v3387, %v3442
      %3444 = vst [vmem:[%s3411 + $0x20] sm:$0xf] %v3443
      %v3445 = vld [vmem:[%s3411 + $0x24] sm:$0x1]
      %v3446 = vsel %vm3420, %v3388, %v3445
      %3447 = vst [vmem:[%s3411 + $0x24] sm:$0x1] %v3446
      %v3448 = vld [vmem:[%s3411 + $0x28] sm:$0xf]
      %v3449 = vsel %vm3414, %v3389, %v3448
      %3450 = vst [vmem:[%s3411 + $0x28] sm:$0xf] %v3449
      %v3451 = vld [vmem:[%s3411 + $0x2c] sm:$0x1]
      %v3452 = vsel %vm3420, %v3390, %v3451
      %3453 = vst [vmem:[%s3411 + $0x2c] sm:$0x1] %v3452
      %v3454 = vld [vmem:[%s3411 + $0x30] sm:$0xf]
      %v3455 = vsel %vm3414, %v3391, %v3454
      %3456 = vst [vmem:[%s3411 + $0x30] sm:$0xf] %v3455
      %v3457 = vld [vmem:[%s3411 + $0x34] sm:$0x1]
      %v3458 = vsel %vm3420, %v3392, %v3457
      %3459 = vst [vmem:[%s3411 + $0x34] sm:$0x1] %v3458
      %v3460 = vld [vmem:[%s3411 + $0x38] sm:$0xf]
      %v3461 = vsel %vm3414, %v3393, %v3460
      %3462 = vst [vmem:[%s3411 + $0x38] sm:$0xf] %v3461
      %v3463 = vld [vmem:[%s3411 + $0x3c] sm:$0x1]
      %v3464 = vsel %vm3420, %v3394, %v3463
      %3465 = vst [vmem:[%s3411 + $0x3c] sm:$0x1] %v3464
      %p3466 = scmp.lt.s32.totalorder %s14, 1
      %s3467 = scalar_select %p3466, %s14, 1
      %s3468 = smul.addr %s3467, 20
      %s3469 = smul.addr %s3468, 4
      %s3470 = scalar_lea.vmem %s3, %s3469
      // Predicated region
      $region33: #{tpu_custom_call.1} parent=31 // pred_check
        %p3471 = pneg %p100
      $region34: #{tpu_custom_call.1} parent=31 // pred_check_branch
        %3473 = sbr.rel (%p3471) target = $region36
      $region35: #{tpu_custom_call.1} parent=31 // pred_region
        _
      $region36: #{tpu_custom_call.1} parent=31 // pred_fallthru
        _
    $region32: #{tpu_custom_call.1} parent=5 // pred_fallthru
      _
    %p3474 = scmp.le.s32.totalorder 2, %s9
    // Predicated region
    $region37: #{tpu_custom_call.1} parent=5 // pred_check
      %p3475 = pneg %p3474
    $region38: #{tpu_custom_call.1} parent=5 // pred_check_branch
      %3477 = sbr.rel (%p3475) target = $region40
    $region39: #{tpu_custom_call.1} parent=5 // pred_region
      %s3478 = ssub.s32 %s9, 2
      // Predicated region
      $region41: #{tpu_custom_call.1} parent=39 // pred_check
        %p3479 = pneg %p106
      $region42: #{tpu_custom_call.1} parent=39 // pred_check_branch
        %3481 = sbr.rel (%p3479) target = $region44
      $region43: #{tpu_custom_call.1} parent=39 // pred_region
        %p3482 = scmp.lt.s32.totalorder %s15, 1
        %s3483 = scalar_select %p3482, %s15, 1
        %s3484 = smul.addr %s3483, 20
        %s3485 = smul.addr %s3484, 4
        %s3486 = scalar_lea.vmem %s3, %s3485
      $region44: #{tpu_custom_call.1} parent=39 // pred_fallthru
        _
    $region40: #{tpu_custom_call.1} parent=5 // pred_fallthru
      _
  $region6: #{tpu_custom_call.1} parent=0 // loop_footer
    %s13 = sadd.s32 1, %s9
  $region7: #{tpu_custom_call.1} parent=0 // loop_footer_branch
    %8 = sbr.rel target = $region3
  $region8: #{tpu_custom_call.1} parent=0 // loop_exit
    _

</llo_original>
